<compile_context>
chip_gen: v7x
topology: tpu7x:2x2x1
jax: 0.10.0
libtpu: 0.0.40
codegen_flags: <defaults>
</compile_context>

<pallas_src>
import functools

import jax
import jax.numpy as jnp
from jax.experimental import pallas as pl
from jax.experimental.pallas import tpu as pltpu


# ----------------------------- schedule (glue, plain JAX) -------------------

def sigmoid_beta_schedule(timesteps, start=-3.0, end=3.0, tau=1.0):
    steps = timesteps + 1
    t = jnp.linspace(0.0, timesteps, steps, dtype=jnp.float32) / timesteps
    v_start = jax.nn.sigmoid(jnp.asarray(start / tau, jnp.float32))
    v_end = jax.nn.sigmoid(jnp.asarray(end / tau, jnp.float32))
    alphas_cumprod = (-jax.nn.sigmoid((t * (end - start) + start) / tau) + v_end) / (v_end - v_start)
    alphas_cumprod = alphas_cumprod / alphas_cumprod[0]
    betas = 1.0 - (alphas_cumprod[1:] / alphas_cumprod[:-1])
    return jnp.clip(betas, 0.0, 0.999)


def make_diffusion_buffers(timesteps):
    betas = sigmoid_beta_schedule(timesteps)
    alphas = 1.0 - betas
    alphas_cumprod = jnp.cumprod(alphas, axis=0)
    return {
        "betas": betas,
        "alphas_cumprod": alphas_cumprod,
        "sqrt_alphas_cumprod": jnp.sqrt(alphas_cumprod),
        "sqrt_one_minus_alphas_cumprod": jnp.sqrt(1.0 - alphas_cumprod),
    }


# ----------------------------- tiling helpers --------------------------------

def pick_tiles(D, tk_target=512, tn_target=1024):
    """Largest lane/MXU-aligned divisors of D not exceeding the targets."""
    # TODO(synk): non-multiple-of-128 D would need padding / pl.BoundedSlice.
    assert D % 128 == 0, "flattened feature dim must be a multiple of 128"

    def fit(target):
        t = max(128, min((target // 128) * 128, D))
        while D % t != 0:
            t -= 128
        return t

    return fit(tk_target), fit(tn_target)


def pretile_weight(w, tk, tn):
    """(D, D) -> (k_tiles, n_tiles, tk, tn): every streamed W tile is one dense DMA."""
    Dk, Dn = w.shape
    return w.reshape(Dk // tk, tk, Dn // tn, tn).transpose(0, 2, 1, 3)


def _vmem_limit_bytes(footprint_bytes):
    """Footprint-derived scoped-VMEM limit, capped at 75% of the chip's VMEM."""
    want = int(footprint_bytes) * 2 + (8 << 20)      # pipeline slack + Mosaic internal scratch
    try:
        cap = int(getattr(pltpu.get_tpu_info(), "vmem_capacity_bytes", 0)) or (64 << 20)
    except Exception:
        cap = 64 << 20                                # conservative fallback (v7x: 64 MiB / TC)
    return int(min(max(want, 16 << 20), (cap * 3) // 4))


# ----------------------------- Pallas kernel --------------------------------

def p_losses_kernel(c1_ref, c2_ref, x0_ref, noise_k_ref, w_ref, b_ref,
                    noise_n_ref, out_ref, acc_ref, xt_ref):
    # Grid: (k, n) -- k tiles the contraction (outer, reduction), n tiles the
    # output/lane axis of W (inner).
    #   c1/c2:      (B, 1) f32 diffusion coeffs, constant index -> fetched once
    #   x0/noise_k: (B, tk) f32 K-stream blocks, index (0, k) -> fetched once per k
    #   w:          (tk, tn) bf16 pre-tiled weight tile (one dense DMA per tile)
    #   b:          (1, tn) f32 bias tile
    #   noise_n:    (B, tn) f32 N-stream block (L1 target)
    #   out:        (B, 1) f32 resident output: per-batch sum of |model_out - noise|
    #   acc:        VMEM (B, D) f32 persistent accumulator
    #   xt:         VMEM (B, tk) bf16 persistent q_sample block (reused across n)
    k = pl.program_id(0)
    n = pl.program_id(1)
    last_k = pl.num_programs(0) - 1
    B, tk = xt_ref.shape
    tn = w_ref.shape[-1]

    # q_sample for this K block: computed once per outer step, reused by every N tile.
    @pl.when(n == 0)
    def _q_sample():
        x_t = c1_ref[...] * x0_ref[...] + c2_ref[...] * noise_k_ref[...]   # f32 (v5e-safe)
        xt_ref[...] = x_t.astype(jnp.bfloat16)

    col = pl.multiple_of(n * tn, tn)                  # lane offset, tn-aligned
    acc = acc_ref.at[:, pl.ds(col, tn)]

    @pl.when(k == 0)
    def _init_acc():
        acc[...] = jnp.zeros((B, tn), jnp.float32)

    acc[...] = acc[...] + jnp.dot(xt_ref[...], w_ref[...],
                                  preferred_element_type=jnp.float32)

    # Epilogue exactly once per N tile, accumulated into the resident (B, 1)
    # output -> a single HBM writeback at the end of the whole grid.
    @pl.when((k == last_k) & (n == 0))
    def _init_out():
        out_ref[...] = jnp.zeros_like(out_ref)

    @pl.when(k == last_k)
    def _finalize():
        model_out = acc[...] + b_ref[...]                        # f32 epilogue
        diff = jnp.abs(model_out - noise_n_ref[...])             # L1 vs noise target
        out_ref[...] = out_ref[...] + jnp.sum(diff, axis=-1, keepdims=True)


def p_losses(x_start_flat, noise_flat, c1, c2, w_tiled, bias, *, tk, tn):
    B, D = x_start_flat.shape
    k_tiles, n_tiles = int(w_tiled.shape[0]), int(w_tiled.shape[1])
    assert w_tiled.shape == (k_tiles, n_tiles, tk, tn)
    assert k_tiles * tk == D and n_tiles * tn == D

    # VMEM footprint: double-buffered streamed blocks + persistent scratch.
    footprint = (
        2 * tk * tn * 2                     # W tile, bf16, double buffered (dominant)
        + 2 * 2 * B * tk * 4                # x_start + noise K-stream blocks
        + 2 * (1 + B) * tn * 4              # bias + noise N-stream blocks
        + B * D * 4                         # persistent f32 accumulator
        + B * tk * 2                        # persistent bf16 q_sample block
        + 4 * B * 4                         # c1, c2, out (resident, tiny)
    )

    out = pl.pallas_call(
        p_losses_kernel,
        out_shape=jax.ShapeDtypeStruct((B, 1), jnp.float32),
        grid_spec=pltpu.PrefetchScalarGridSpec(
            num_scalar_prefetch=0,
            grid=(k_tiles, n_tiles),                              # K outer, N inner
            in_specs=[
                pl.BlockSpec((B, 1), lambda k, n: (0, 0)),        # c1 (resident)
                pl.BlockSpec((B, 1), lambda k, n: (0, 0)),        # c2 (resident)
                pl.BlockSpec((B, tk), lambda k, n: (0, k)),       # x_start (K stream)
                pl.BlockSpec((B, tk), lambda k, n: (0, k)),       # noise   (K stream, q_sample)
                # Pre-tiled W: one dense DMA per tile.  If the profile still shows
                # exposed DMA, add pipeline_mode=pl.Buffered(3) here (VMEM permitting).
                pl.BlockSpec((None, None, tk, tn),
                             lambda k, n: (k, n, 0, 0)),          # W bf16 tile
                pl.BlockSpec((1, tn), lambda k, n: (0, n)),       # bias    (N stream)
                pl.BlockSpec((B, tn), lambda k, n: (0, n)),       # noise   (N stream, target)
            ],
            out_specs=pl.BlockSpec((B, 1), lambda k, n: (0, 0)),  # resident output
            scratch_shapes=[
                pltpu.VMEM((B, D), jnp.float32),                  # persistent accumulator
                pltpu.VMEM((B, tk), jnp.bfloat16),                # persistent q_sample block
            ],
        ),
        compiler_params=pltpu.CompilerParams(
            # K is a reduction; N carries cross-step state (xt scratch + resident
            # output) so megacore sharding would be unsafe.  The kernel is HBM-bound
            # at these tile sizes, so "parallel" would not buy bandwidth anyway.
            dimension_semantics=("arbitrary", "arbitrary"),
            vmem_limit_bytes=_vmem_limit_bytes(footprint),
        ),
        cost_estimate=pl.CostEstimate(
            flops=2 * B * D * D + 4 * B * D,
            transcendentals=0,
            bytes_accessed=int(
                D * D * 2                      # W (bf16), each tile exactly once
                + 2 * B * D * 4                # x_start + noise K stream, once
                + k_tiles * (1 + B) * D * 4    # bias + noise N stream, per outer k
                + 3 * B * 4                    # c1, c2, out
            ),
        ),
    )(c1, c2, x_start_flat, noise_flat, w_tiled, bias, noise_flat)

    # out[b, 0] = sum_D |model_out - noise|; mean over features, then over batch.
    return jnp.mean(out[:, 0] / D)


# ----------------------------- wrapper (module forward) ---------------------

def gaussian_diffusion_forward(traffic, buffers, params, key, *, tk, tn):
    """traffic: (B, C, T, H, W) float32, NCTHW (PyTorch convention)."""
    B = traffic.shape[0]
    D = int(traffic.shape[1] * traffic.shape[2] * traffic.shape[3] * traffic.shape[4])
    num_timesteps = buffers["betas"].shape[0]

    k_t, k_noise = jax.random.split(key)
    t = jax.random.randint(k_t, (B,), 0, num_timesteps)              # torch.randint
    noise = jax.random.normal(k_noise, traffic.shape, jnp.float32)    # randn_like

    # extract(buf, t, shape): gather -> per-batch (B, 1) coefficient columns
    c1 = buffers["sqrt_alphas_cumprod"][t][:, None]
    c2 = buffers["sqrt_one_minus_alphas_cumprod"][t][:, None]

    x0_flat = traffic.reshape(B, D).astype(jnp.float32)
    noise_flat = noise.reshape(B, D)

    return p_losses(x0_flat, noise_flat, c1, c2, params["w_tiled"], params["b"],
                    tk=tk, tn=tn)


# ----------------------------- main ------------------------------------------

if __name__ == "__main__":
    # (batch, channels, window, image_size, image_size); D = 2048 -> grid (4, 2)
    B, C, T, H, W = 2, 1, 8, 16, 16
    D = C * T * H * W
    NUM_TIMESTEPS = 1000

    key = jax.random.PRNGKey(0)
    k_x, k_w, k_b, k_fwd = jax.random.split(key, 4)

    # deterministic synthetic inputs / surrogate-model parameters
    traffic = jax.random.uniform(k_x, (B, C, T, H, W), jnp.float32)   # data in [0, 1)
    w_bf16 = (jax.random.normal(k_w, (D, D), jnp.float32) / jnp.sqrt(D)).astype(jnp.bfloat16)
    bias = jax.random.normal(k_b, (1, D), jnp.float32) * 0.02

    tk, tn = pick_tiles(D)
    params = {"w_tiled": pretile_weight(w_bf16, tk, tn), "b": bias}   # W pre-tiled once
    buffers = make_diffusion_buffers(NUM_TIMESTEPS)

    fwd = jax.jit(functools.partial(gaussian_diffusion_forward, tk=tk, tn=tn))
    loss = jax.block_until_ready(fwd(traffic, buffers, params, k_fwd))

    # pure-JAX reference of the same fused path (replays the same RNG splits)
    k_t, k_noise = jax.random.split(k_fwd)
    t_ref = jax.random.randint(k_t, (B,), 0, NUM_TIMESTEPS)
    noise_ref = jax.random.normal(k_noise, traffic.shape, jnp.float32)
    c1_ref = buffers["sqrt_alphas_cumprod"][t_ref][:, None]
    c2_ref = buffers["sqrt_one_minus_alphas_cumprod"][t_ref][:, None]
    x0_ref = traffic.reshape(B, D)
    nz_ref = noise_ref.reshape(B, D)
    x_t_ref = c1_ref * x0_ref + c2_ref * nz_ref
    mo_ref = jnp.dot(x_t_ref.astype(jnp.bfloat16), w_bf16,
                     preferred_element_type=jnp.float32) + bias
    loss_ref = jnp.mean(jnp.mean(jnp.abs(mo_ref - nz_ref), axis=-1))

    assert loss.shape == () and bool(jnp.isfinite(loss))
    assert jnp.allclose(loss, loss_ref, rtol=1e-2, atol=1e-2), (loss, loss_ref)
    print("KERNEL_OK")
</pallas_src>

<mosaic_0001>
module attributes {stable_mosaic.version = 11 : i64} {
  func.func @p_losses_kernel(%arg0: i32, %arg1: i32, %arg2: memref<2x1xf32, #tpu.memory_space<vmem>>, %arg3: memref<2x1xf32, #tpu.memory_space<vmem>>, %arg4: memref<2x512xf32, #tpu.memory_space<vmem>>, %arg5: memref<2x512xf32, #tpu.memory_space<vmem>>, %arg6: memref<1x1x512x1024xbf16, #tpu.memory_space<vmem>>, %arg7: memref<1x1024xf32, #tpu.memory_space<vmem>>, %arg8: memref<2x1024xf32, #tpu.memory_space<vmem>>, %arg9: memref<2x1xf32, #tpu.memory_space<vmem>>, %arg10: memref<2x2048xf32, #tpu.memory_space<vmem>>, %arg11: memref<2x512xbf16, #tpu.memory_space<vmem>>) attributes {dimension_semantics = [#tpu.dimension_semantics<arbitrary>, #tpu.dimension_semantics<arbitrary>], iteration_bounds = array<i64: 4, 2>, scalar_prefetch = 0 : i64, scratch_operands = 2 : i64, tpu.core_type = #tpu.core_type<tc>, window_params = [{pipeline_mode = #tpu.pipeline_mode<synchronous>, transform_indices = @transform_0, window_bounds = array<i64: 2, 1>}, {pipeline_mode = #tpu.pipeline_mode<synchronous>, transform_indices = @transform_1, window_bounds = array<i64: 2, 1>}, {transform_indices = @transform_2, window_bounds = array<i64: 2, 512>}, {transform_indices = @transform_3, window_bounds = array<i64: 2, 512>}, {transform_indices = @transform_4, window_bounds = array<i64: 1, 1, 512, 1024>}, {transform_indices = @transform_5, window_bounds = array<i64: 1, 1024>}, {transform_indices = @transform_6, window_bounds = array<i64: 2, 1024>}, {pipeline_mode = #tpu.pipeline_mode<synchronous>, transform_indices = @transform_7, window_bounds = array<i64: 2, 1>}]} {
    %c0_i32 = arith.constant 0 : i32
    %0 = arith.cmpi eq, %arg1, %c0_i32 : i32
    %1 = arith.extui %0 : i1 to i32
    %c0_i32_0 = arith.constant 0 : i32
    %2 = arith.cmpi ne, %1, %c0_i32_0 : i32
    scf.if %2 {
      %c0_14 = arith.constant 0 : index
      %c0_15 = arith.constant 0 : index
      %25 = vector.load %arg2[%c0_14, %c0_15] : memref<2x1xf32, #tpu.memory_space<vmem>>, vector<2x1xf32>
      %c0_16 = arith.constant 0 : index
      %c0_17 = arith.constant 0 : index
      %26 = vector.load %arg4[%c0_16, %c0_17] : memref<2x512xf32, #tpu.memory_space<vmem>>, vector<2x512xf32>
      %27 = vector.broadcast %25 : vector<2x1xf32> to vector<2x512xf32>
      %28 = arith.mulf %27, %26 : vector<2x512xf32>
      %c0_18 = arith.constant 0 : index
      %c0_19 = arith.constant 0 : index
      %29 = vector.load %arg3[%c0_18, %c0_19] : memref<2x1xf32, #tpu.memory_space<vmem>>, vector<2x1xf32>
      %c0_20 = arith.constant 0 : index
      %c0_21 = arith.constant 0 : index
      %30 = vector.load %arg5[%c0_20, %c0_21] : memref<2x512xf32, #tpu.memory_space<vmem>>, vector<2x512xf32>
      %31 = vector.broadcast %29 : vector<2x1xf32> to vector<2x512xf32>
      %32 = arith.mulf %31, %30 : vector<2x512xf32>
      %33 = arith.addf %28, %32 : vector<2x512xf32>
      %34 = arith.truncf %33 : vector<2x512xf32> to vector<2x512xbf16>
      %c0_22 = arith.constant 0 : index
      %c0_23 = arith.constant 0 : index
      %35 = vector.load %arg11[%c0_22, %c0_23] : memref<2x512xbf16, #tpu.memory_space<vmem>>, vector<2x512xbf16>
      tpu.vector_store %arg11[%c0_22, %c0_23], %34 {strides = array<i32>} : memref<2x512xbf16, #tpu.memory_space<vmem>>, vector<2x512xbf16>,
    } else {
    }
    %c1024_i32 = arith.constant 1024 : i32
    %3 = arith.muli %arg1, %c1024_i32 : i32
    %4 = tpu.assume_multiple %3, 1024 : i32
    %c0_i32_1 = arith.constant 0 : i32
    %5 = arith.cmpi eq, %arg0, %c0_i32_1 : i32
    %6 = arith.extui %5 : i1 to i32
    %c0_i32_2 = arith.constant 0 : i32
    %7 = arith.cmpi ne, %6, %c0_i32_2 : i32
    scf.if %7 {
      %cst_14 = arith.constant 0.000000e+00 : f32
      %25 = vector.broadcast %cst_14 : f32 to vector<2x1024xf32>
      %c0_15 = arith.constant 0 : index
      %26 = arith.index_cast %4 : i32 to index
      %27 = vector.load %arg10[%c0_15, %26] : memref<2x2048xf32, #tpu.memory_space<vmem>>, vector<2x1024xf32>
      tpu.vector_store %arg10[%c0_15, %26], %25 {strides = array<i32>} : memref<2x2048xf32, #tpu.memory_space<vmem>>, vector<2x1024xf32>,
    } else {
    }
    %c0 = arith.constant 0 : index
    %8 = arith.index_cast %4 : i32 to index
    %9 = vector.load %arg10[%c0, %8] : memref<2x2048xf32, #tpu.memory_space<vmem>>, vector<2x1024xf32>
    %c0_3 = arith.constant 0 : index
    %c0_4 = arith.constant 0 : index
    %10 = vector.load %arg11[%c0_3, %c0_4] : memref<2x512xbf16, #tpu.memory_space<vmem>>, vector<2x512xbf16>
    %c0_5 = arith.constant 0 : index
    %c0_6 = arith.constant 0 : index
    %c0_7 = arith.constant 0 : index
    %c0_8 = arith.constant 0 : index
    %11 = vector.load %arg6[%c0_5, %c0_6, %c0_7, %c0_8] : memref<1x1x512x1024xbf16, #tpu.memory_space<vmem>>, vector<1x1x512x1024xbf16>
    %12 = vector.shape_cast %11 : vector<1x1x512x1024xbf16> to vector<512x1024xbf16>
    %cst = arith.constant dense<0.000000e+00> : vector<2x1024xf32>
    %13 = tpu.matmul %10, %12, %cst {dimension_numbers = #tpu.dot_dimension_numbers<[1], [0], [0], [1], [0, 0, 1, 1], [], []>} : vector<2x512xbf16>, vector<512x1024xbf16>, vector<2x1024xf32> -> vector<2x1024xf32>
    %14 = arith.addf %9, %13 : vector<2x1024xf32>
    %c0_9 = arith.constant 0 : index
    %15 = arith.index_cast %4 : i32 to index
    %16 = vector.load %arg10[%c0_9, %15] : memref<2x2048xf32, #tpu.memory_space<vmem>>, vector<2x1024xf32>
    tpu.vector_store %arg10[%c0_9, %15], %14 {strides = array<i32>} : memref<2x2048xf32, #tpu.memory_space<vmem>>, vector<2x1024xf32>,
    %c3_i32 = arith.constant 3 : i32
    %17 = arith.cmpi eq, %arg0, %c3_i32 : i32
    %c0_i32_10 = arith.constant 0 : i32
    %18 = arith.cmpi eq, %arg1, %c0_i32_10 : i32
    %19 = arith.andi %17, %18 : i1
    %20 = arith.extui %19 : i1 to i32
    %c0_i32_11 = arith.constant 0 : i32
    %21 = arith.cmpi ne, %20, %c0_i32_11 : i32
    scf.if %21 {
      %cst_14 = arith.constant 0.000000e+00 : f32
      %25 = vector.broadcast %cst_14 : f32 to vector<2x1xf32>
      %c0_15 = arith.constant 0 : index
      %c0_16 = arith.constant 0 : index
      %26 = vector.load %arg9[%c0_15, %c0_16] : memref<2x1xf32, #tpu.memory_space<vmem>>, vector<2x1xf32>
      tpu.vector_store %arg9[%c0_15, %c0_16], %25 {strides = array<i32>} : memref<2x1xf32, #tpu.memory_space<vmem>>, vector<2x1xf32>,
    } else {
    }
    %c3_i32_12 = arith.constant 3 : i32
    %22 = arith.cmpi eq, %arg0, %c3_i32_12 : i32
    %23 = arith.extui %22 : i1 to i32
    %c0_i32_13 = arith.constant 0 : i32
    %24 = arith.cmpi ne, %23, %c0_i32_13 : i32
    scf.if %24 {
      %c0_14 = arith.constant 0 : index
      %25 = arith.index_cast %4 : i32 to index
      %26 = vector.load %arg10[%c0_14, %25] : memref<2x2048xf32, #tpu.memory_space<vmem>>, vector<2x1024xf32>
      %c0_15 = arith.constant 0 : index
      %c0_16 = arith.constant 0 : index
      %27 = vector.load %arg7[%c0_15, %c0_16] : memref<1x1024xf32, #tpu.memory_space<vmem>>, vector<1x1024xf32>
      %28 = vector.broadcast %27 : vector<1x1024xf32> to vector<2x1024xf32>
      %29 = arith.addf %26, %28 : vector<2x1024xf32>
      %c0_17 = arith.constant 0 : index
      %c0_18 = arith.constant 0 : index
      %30 = vector.load %arg8[%c0_17, %c0_18] : memref<2x1024xf32, #tpu.memory_space<vmem>>, vector<2x1024xf32>
      %31 = arith.subf %29, %30 : vector<2x1024xf32>
      %32 = math.absf %31 : vector<2x1024xf32>
      %c0_19 = arith.constant 0 : index
      %c0_20 = arith.constant 0 : index
      %33 = vector.load %arg9[%c0_19, %c0_20] : memref<2x1xf32, #tpu.memory_space<vmem>>, vector<2x1xf32>
      %cst_21 = arith.constant dense<0.000000e+00> : vector<2xf32>
      %34 = vector.multi_reduction <add>, %32, %cst_21 [1] : vector<2x1024xf32> to vector<2xf32>
      %35 = vector.shape_cast %34 : vector<2xf32> to vector<2x1xf32>
      %36 = arith.addf %33, %35 : vector<2x1xf32>
      %c0_22 = arith.constant 0 : index
      %c0_23 = arith.constant 0 : index
      %37 = vector.load %arg9[%c0_22, %c0_23] : memref<2x1xf32, #tpu.memory_space<vmem>>, vector<2x1xf32>
      tpu.vector_store %arg9[%c0_22, %c0_23], %36 {strides = array<i32>} : memref<2x1xf32, #tpu.memory_space<vmem>>, vector<2x1xf32>,
    } else {
    }
    return
  }
  func.func @transform_0(%arg0: i32, %arg1: i32) -> (i32, i32) {
    %c0_i32 = arith.constant 0 : i32
    %c0_i32_0 = arith.constant 0 : i32
    %c0_i32_1 = arith.constant 0 : i32
    return %c0_i32, %c0_i32_0 : i32, i32
  }
  func.func @transform_1(%arg0: i32, %arg1: i32) -> (i32, i32) {
    %c0_i32 = arith.constant 0 : i32
    %c0_i32_0 = arith.constant 0 : i32
    %c0_i32_1 = arith.constant 0 : i32
    return %c0_i32, %c0_i32_0 : i32, i32
  }
  func.func @transform_2(%arg0: i32, %arg1: i32) -> (i32, i32) {
    %c0_i32 = arith.constant 0 : i32
    %c0_i32_0 = arith.constant 0 : i32
    return %c0_i32, %arg0 : i32, i32
  }
  func.func @transform_3(%arg0: i32, %arg1: i32) -> (i32, i32) {
    %c0_i32 = arith.constant 0 : i32
    %c0_i32_0 = arith.constant 0 : i32
    return %c0_i32, %arg0 : i32, i32
  }
  func.func @transform_4(%arg0: i32, %arg1: i32) -> (i32, i32, i32, i32) {
    %c0_i32 = arith.constant 0 : i32
    %c0_i32_0 = arith.constant 0 : i32
    %c0_i32_1 = arith.constant 0 : i32
    return %arg0, %arg1, %c0_i32, %c0_i32_0 : i32, i32, i32, i32
  }
  func.func @transform_5(%arg0: i32, %arg1: i32) -> (i32, i32) {
    %c0_i32 = arith.constant 0 : i32
    %c0_i32_0 = arith.constant 0 : i32
    return %c0_i32, %arg1 : i32, i32
  }
  func.func @transform_6(%arg0: i32, %arg1: i32) -> (i32, i32) {
    %c0_i32 = arith.constant 0 : i32
    %c0_i32_0 = arith.constant 0 : i32
    return %c0_i32, %arg1 : i32, i32
  }
  func.func @transform_7(%arg0: i32, %arg1: i32) -> (i32, i32) {
    %c0_i32 = arith.constant 0 : i32
    %c0_i32_0 = arith.constant 0 : i32
    %c0_i32_1 = arith.constant 0 : i32
    return %c0_i32, %c0_i32_0 : i32, i32
  }
}

</mosaic_0001>

<llo_original>
// kernel: gaussian_diffusion_forward.21
$region0: #{gaussian_diffusion_forward.21}
  #allocation0 [shape = 'u32[]', space=smem, size = 0x4, offset = 0x4, fixed_abs, tag = 'smem constant byte address 0x4 - core index']
  #allocation1 [shape = 'u32[144,128]{1,0:T(1,128)}', space=vmem, size = 0x12000, scoped, tag = 'internal scratch']
  #allocation2 [shape = 'f32[2,2048]{1,0:T(2,128)}', space=vmem, size = 0x4000, scoped, tag = 'scratch operand']
  #allocation3 [shape = 'bf16[2,512]{1,0:T(2,128)(2,1)}', space=vmem, size = 0x800, scoped, tag = 'scratch operand']
  %s0 = inlined_call_operand.vmem [shape: f32[2,1], index: 0, kind: input, shape index: {}]
  %s1 = inlined_call_operand.vmem [shape: f32[2,1], index: 1, kind: input, shape index: {}]
  %s2 = inlined_call_operand.vmem [shape: f32[2,2048], index: 2, kind: input, shape index: {}]
  %s3 = inlined_call_operand.vmem [shape: f32[2,2048], index: 3, kind: input, shape index: {}, may-alias: {3,6}]
  %s4 = inlined_call_operand.hbm [shape: bf16[4,2,512,1024], index: 4, kind: input, shape index: {}]
  %s5 = inlined_call_operand.hbm [shape: f32[1,2048], index: 5, kind: input, shape index: {}]
  %s6 = inlined_call_operand.vmem [shape: f32[2,2048], index: 6, kind: input, shape index: {}, may-alias: {3,6}]
  %s7 = inlined_call_operand.vmem [shape: f32[2,1], index: 7, kind: output, shape index: {}]
  %s8 = sld [smem:[#allocation0]]
  $region85: #{gaussian_diffusion_forward.21} parent=0
    _
  %s10 = ssub.s32 1, %s8
  %s11 = scalar_select 0, %s10, %s8
  $region1: #{gaussian_diffusion_forward.21} parent=0
    #allocation4 [shape = 'u8[2097152]{0}', space=vmem, size = 0x200000, scoped, tag = 'input window, operand 4']
    #allocation5 [shape = 's32[2]{0}', space=sflag, size = 0x8, scoped, tag = 'scoped memory for gaussian_diffusion_forward.21']
    #allocation6 [shape = 'u8[8192]{0}', space=vmem, size = 0x2000, scoped, tag = 'input window, operand 5']
    #allocation7 [shape = 's32[2]{0}', space=sflag, size = 0x8, scoped, tag = 'scoped memory for gaussian_diffusion_forward.21']
    %12 = vsyncpa [#allocation5], 0
    %s13 = scalar_lea.sflag [#allocation5], 1
    %14 = vsyncpa %s13, 0
    %15 = vsyncpa [#allocation7], 0
    %s16 = scalar_lea.sflag [#allocation7], 1
    %17 = vsyncpa %s16, 0
    loop: start=0, step=1, limit=10
    $region2: #{gaussian_diffusion_forward.21} parent=1 // loop_pre_header
      _
    $region3: #{gaussian_diffusion_forward.21} parent=1 // loop_header
      %s19 = sphi 0, %s23
      %p20 = scmp.ge.s32.totalorder %s19, 10
      %s26 = sphi 0, %s38
      %s27 = sphi 0, %s34
      %s28 = sphi 0, %s26
      %s29 = sphi 0, %s27
      %s30 = sphi 0, %s28
      %s31 = sphi 0, %s29
      %s39 = sphi 0, %s39
      %s41 = sphi 0, %s39
      %s42 = sphi 0, %s41
      %s56 = sphi 0, %s42
      %s60 = sphi 0, %s60
      %s62 = sphi 0, %s60
      %s63 = sphi 0, %s62
      %s77 = sphi 0, %s63
      %s83 = sphi 0, %s85
      %s86 = sphi 0, %s83
      %s87 = sphi 0, %s86
      %s103 = sphi 0, %s87
      %s109 = sphi 0, %s111
      %s112 = sphi 0, %s109
      %s113 = sphi 0, %s112
      %s129 = sphi 0, %s113
      %s137 = sphi 0, %s139
      %s140 = sphi 0, %s137
      %s141 = sphi 0, %s140
      %s157 = sphi 0, %s141
      %s163 = sphi 0, %s165
      %s166 = sphi 0, %s163
      %s167 = sphi 0, %s166
      %s183 = sphi 0, %s167
      %s189 = sphi 0, %s191
      %s192 = sphi 0, %s189
      %s193 = sphi 0, %s192
      %s209 = sphi 0, %s193
      %s213 = sphi 0, %s213
      %s215 = sphi 0, %s213
      %s216 = sphi 0, %s215
      %s230 = sphi 0, %s216
    $region4: #{gaussian_diffusion_forward.21} parent=1 // loop_header_branch
      %22 = sbr.rel (%p20) target = $region8
    $region5: #{gaussian_diffusion_forward.21} parent=1 // loop_body
      %s24 = ssub.s32 %s19, 1
      %s25 = ssub.s32 %s19, 2
      %s32 = sadd.s32 1, %s27
      %p33 = scmp.ge.s32.totalorder %s32, 2
      %s34 = scalar_select %p33, 0, %s32
      %s35 = sadd.s32 1, %s26
      %s36 = scalar_select %p33, %s35, %s26
      %p37 = scmp.ge.s32.totalorder %s36, 4
      %s38 = scalar_select %p37, 0, %s36
      %s40 = sadd.s32 %s39, 1
      %p43 = scmp.eq.s32.totalorder %s19, 7
      %p44 = scmp.ne.s32.totalorder %s39, %s41
      %p45 = scmp.eq.s32.totalorder %s19, 0
      %p46 = por %p44, %p45
      %p47 = scmp.ne.s32.totalorder %s39, %s41
      %p48 = scmp.eq.s32.totalorder %s24, 7
      %p49 = por %p47, %p48
      %p50 = scmp.ne.s32.totalorder %s41, %s42
      %p51 = scmp.eq.s32.totalorder %s24, 0
      %p52 = por %p50, %p51
      %p53 = scmp.ne.s32.totalorder %s41, %s42
      %p54 = scmp.eq.s32.totalorder %s25, 7
      %p55 = por %p53, %p54
      %p57 = scmp.ne.s32.totalorder %s42, %s56
      %p58 = scmp.eq.s32.totalorder %s25, 0
      %p59 = por %p57, %p58
      %s61 = sadd.s32 %s60, 1
      %p64 = scmp.eq.s32.totalorder %s19, 7
      %p65 = scmp.ne.s32.totalorder %s60, %s62
      %p66 = scmp.eq.s32.totalorder %s19, 0
      %p67 = por %p65, %p66
      %p68 = scmp.ne.s32.totalorder %s60, %s62
      %p69 = scmp.eq.s32.totalorder %s24, 7
      %p70 = por %p68, %p69
      %p71 = scmp.ne.s32.totalorder %s62, %s63
      %p72 = scmp.eq.s32.totalorder %s24, 0
      %p73 = por %p71, %p72
      %p74 = scmp.ne.s32.totalorder %s62, %s63
      %p75 = scmp.eq.s32.totalorder %s25, 7
      %p76 = por %p74, %p75
      %p78 = scmp.ne.s32.totalorder %s63, %s77
      %p79 = scmp.eq.s32.totalorder %s25, 0
      %p80 = por %p78, %p79
      %s81 = ssub.s32 %s26, %s38
      %p82 = scmp.eq.s32.totalorder %s81, 0
      %s84 = sadd.s32 %s83, 1
      %s85 = scalar_select %p82, %s83, %s84
      %p88 = pneg %p82
      %p89 = scmp.eq.s32.totalorder %s19, 7
      %p90 = por %p88, %p89
      %p91 = scmp.ne.s32.totalorder %s83, %s86
      %p92 = scmp.eq.s32.totalorder %s19, 0
      %p93 = por %p91, %p92
      %p94 = scmp.ne.s32.totalorder %s83, %s86
      %p95 = scmp.eq.s32.totalorder %s24, 7
      %p96 = por %p94, %p95
      %p97 = scmp.ne.s32.totalorder %s86, %s87
      %p98 = scmp.eq.s32.totalorder %s24, 0
      %p99 = por %p97, %p98
      %p100 = scmp.ne.s32.totalorder %s86, %s87
      %p101 = scmp.eq.s32.totalorder %s25, 7
      %p102 = por %p100, %p101
      %p104 = scmp.ne.s32.totalorder %s87, %s103
      %p105 = scmp.eq.s32.totalorder %s25, 0
      %p106 = por %p104, %p105
      %s107 = ssub.s32 %s26, %s38
      %p108 = scmp.eq.s32.totalorder %s107, 0
      %s110 = sadd.s32 %s109, 1
      %s111 = scalar_select %p108, %s109, %s110
      %p114 = pneg %p108
      %p115 = scmp.eq.s32.totalorder %s19, 7
      %p116 = por %p114, %p115
      %p117 = scmp.ne.s32.totalorder %s109, %s112
      %p118 = scmp.eq.s32.totalorder %s19, 0
      %p119 = por %p117, %p118
      %p120 = scmp.ne.s32.totalorder %s109, %s112
      %p121 = scmp.eq.s32.totalorder %s24, 7
      %p122 = por %p120, %p121
      %p123 = scmp.ne.s32.totalorder %s112, %s113
      %p124 = scmp.eq.s32.totalorder %s24, 0
      %p125 = por %p123, %p124
      %p126 = scmp.ne.s32.totalorder %s112, %s113
      %p127 = scmp.eq.s32.totalorder %s25, 7
      %p128 = por %p126, %p127
      %p130 = scmp.ne.s32.totalorder %s113, %s129
      %p131 = scmp.eq.s32.totalorder %s25, 0
      %p132 = por %p130, %p131
      %s133 = ssub.s32 %s26, %s38
      %s134 = ssub.s32 %s27, %s34
      %s135 = sor.u32 %s133, %s134
      %p136 = scmp.eq.s32.totalorder %s135, 0
      %s138 = sadd.s32 %s137, 1
      %s139 = scalar_select %p136, %s137, %s138
      %p142 = pneg %p136
      %p143 = scmp.eq.s32.totalorder %s19, 7
      %p144 = por %p142, %p143
      %p145 = scmp.ne.s32.totalorder %s137, %s140
      %p146 = scmp.eq.s32.totalorder %s19, 0
      %p147 = por %p145, %p146
      %p148 = scmp.ne.s32.totalorder %s137, %s140
      %p149 = scmp.eq.s32.totalorder %s24, 7
      %p150 = por %p148, %p149
      %p151 = scmp.ne.s32.totalorder %s140, %s141
      %p152 = scmp.eq.s32.totalorder %s24, 0
      %p153 = por %p151, %p152
      %p154 = scmp.ne.s32.totalorder %s140, %s141
      %p155 = scmp.eq.s32.totalorder %s25, 7
      %p156 = por %p154, %p155
      %p158 = scmp.ne.s32.totalorder %s141, %s157
      %p159 = scmp.eq.s32.totalorder %s25, 0
      %p160 = por %p158, %p159
      %s161 = ssub.s32 %s27, %s34
      %p162 = scmp.eq.s32.totalorder %s161, 0
      %s164 = sadd.s32 %s163, 1
      %s165 = scalar_select %p162, %s163, %s164
      %p168 = pneg %p162
      %p169 = scmp.eq.s32.totalorder %s19, 7
      %p170 = por %p168, %p169
      %p171 = scmp.ne.s32.totalorder %s163, %s166
      %p172 = scmp.eq.s32.totalorder %s19, 0
      %p173 = por %p171, %p172
      %p174 = scmp.ne.s32.totalorder %s163, %s166
      %p175 = scmp.eq.s32.totalorder %s24, 7
      %p176 = por %p174, %p175
      %p177 = scmp.ne.s32.totalorder %s166, %s167
      %p178 = scmp.eq.s32.totalorder %s24, 0
      %p179 = por %p177, %p178
      %p180 = scmp.ne.s32.totalorder %s166, %s167
      %p181 = scmp.eq.s32.totalorder %s25, 7
      %p182 = por %p180, %p181
      %p184 = scmp.ne.s32.totalorder %s167, %s183
      %p185 = scmp.eq.s32.totalorder %s25, 0
      %p186 = por %p184, %p185
      %s187 = ssub.s32 %s27, %s34
      %p188 = scmp.eq.s32.totalorder %s187, 0
      %s190 = sadd.s32 %s189, 1
      %s191 = scalar_select %p188, %s189, %s190
      %p194 = pneg %p188
      %p195 = scmp.eq.s32.totalorder %s19, 7
      %p196 = por %p194, %p195
      %p197 = scmp.ne.s32.totalorder %s189, %s192
      %p198 = scmp.eq.s32.totalorder %s19, 0
      %p199 = por %p197, %p198
      %p200 = scmp.ne.s32.totalorder %s189, %s192
      %p201 = scmp.eq.s32.totalorder %s24, 7
      %p202 = por %p200, %p201
      %p203 = scmp.ne.s32.totalorder %s192, %s193
      %p204 = scmp.eq.s32.totalorder %s24, 0
      %p205 = por %p203, %p204
      %p206 = scmp.ne.s32.totalorder %s192, %s193
      %p207 = scmp.eq.s32.totalorder %s25, 7
      %p208 = por %p206, %p207
      %p210 = scmp.ne.s32.totalorder %s193, %s209
      %p211 = scmp.eq.s32.totalorder %s25, 0
      %p212 = por %p210, %p211
      %s214 = sadd.s32 %s213, 1
      %p217 = scmp.eq.s32.totalorder %s19, 7
      %p218 = scmp.ne.s32.totalorder %s213, %s215
      %p219 = scmp.eq.s32.totalorder %s19, 0
      %p220 = por %p218, %p219
      %p221 = scmp.ne.s32.totalorder %s213, %s215
      %p222 = scmp.eq.s32.totalorder %s24, 7
      %p223 = por %p221, %p222
      %p224 = scmp.ne.s32.totalorder %s215, %s216
      %p225 = scmp.eq.s32.totalorder %s24, 0
      %p226 = por %p224, %p225
      %p227 = scmp.ne.s32.totalorder %s215, %s216
      %p228 = scmp.eq.s32.totalorder %s25, 7
      %p229 = por %p227, %p228
      %p231 = scmp.ne.s32.totalorder %s216, %s230
      %p232 = scmp.eq.s32.totalorder %s25, 0
      %p233 = por %p231, %p232
      %p234 = scmp.le.s32.totalorder 1, %s19
      %p235 = scmp.lt.s32.totalorder %s19, 9
      %p236 = pnand %p234, %p235
      %p237 = pneg %p236
      // Predicated region
      $region9: #{gaussian_diffusion_forward.21} parent=5 // pred_check
        _
      $region10: #{gaussian_diffusion_forward.21} parent=5 // pred_check_branch
        %239 = sbr.rel (%p236) target = $region12
      $region11: #{gaussian_diffusion_forward.21} parent=5 // pred_region
        %s240 = ssub.s32 %s19, 1
        // Predicated region
        $region13: #{gaussian_diffusion_forward.21} parent=11 // pred_check
          %p241 = pneg %p52
        $region14: #{gaussian_diffusion_forward.21} parent=11 // pred_check_branch
          %243 = sbr.rel (%p241) target = $region16
        $region15: #{gaussian_diffusion_forward.21} parent=11 // pred_region
          _
        $region16: #{gaussian_diffusion_forward.21} parent=11 // pred_fallthru
          _
        // Predicated region
        $region17: #{gaussian_diffusion_forward.21} parent=11 // pred_check
          %p244 = pneg %p73
        $region18: #{gaussian_diffusion_forward.21} parent=11 // pred_check_branch
          %246 = sbr.rel (%p244) target = $region20
        $region19: #{gaussian_diffusion_forward.21} parent=11 // pred_region
          _
        $region20: #{gaussian_diffusion_forward.21} parent=11 // pred_fallthru
          _
      $region12: #{gaussian_diffusion_forward.21} parent=5 // pred_fallthru
        _
      %p247 = scmp.lt.s32.totalorder %s19, 8
      // Predicated region
      $region21: #{gaussian_diffusion_forward.21} parent=5 // pred_check
        %p248 = pneg %p247
      $region22: #{gaussian_diffusion_forward.21} parent=5 // pred_check_branch
        %250 = sbr.rel (%p248) target = $region24
      $region23: #{gaussian_diffusion_forward.21} parent=5 // pred_region
        // Predicated region
        $region25: #{gaussian_diffusion_forward.21} parent=23 // pred_check
          %p251 = pneg %p93
        $region26: #{gaussian_diffusion_forward.21} parent=23 // pred_check_branch
          %253 = sbr.rel (%p251) target = $region28
        $region27: #{gaussian_diffusion_forward.21} parent=23 // pred_region
          %s254 = smul.u32 4, %s26
          %p255 = scmp.lt.s32.totalorder %s254, 15
          %s256 = scalar_select %p255, %s254, 15
          %s257 = smul.addr %s256, 2
          %s258 = scalar_lea.vmem %s2, %s257
          %s259 = smul.u32 4, %s26
        $region28: #{gaussian_diffusion_forward.21} parent=23 // pred_fallthru
          _
        // Predicated region
        $region29: #{gaussian_diffusion_forward.21} parent=23 // pred_check
          %p260 = pneg %p119
        $region30: #{gaussian_diffusion_forward.21} parent=23 // pred_check_branch
          %262 = sbr.rel (%p260) target = $region32
        $region31: #{gaussian_diffusion_forward.21} parent=23 // pred_region
          %s263 = smul.u32 4, %s26
          %p264 = scmp.lt.s32.totalorder %s263, 15
          %s265 = scalar_select %p264, %s263, 15
          %s266 = smul.addr %s265, 2
          %s267 = scalar_lea.vmem %s3, %s266
          %s268 = smul.u32 4, %s26
        $region32: #{gaussian_diffusion_forward.21} parent=23 // pred_fallthru
          _
        // Predicated region
        $region33: #{gaussian_diffusion_forward.21} parent=23 // pred_check
          %p269 = pneg %p147
        $region34: #{gaussian_diffusion_forward.21} parent=23 // pred_check_branch
          %271 = sbr.rel (%p269) target = $region36
        $region35: #{gaussian_diffusion_forward.21} parent=23 // pred_region
          %s272 = sand.u32 %s137, 1
          %s273 = scalar_lea.sflag [#allocation5], %s272
          %s274 = sand.u32 %s137, 1
          %s275 = smul.addr %s274, 2048
          %s276 = scalar_lea.vmem [#allocation4], %s275
          %s278 = ssub.s32 32768, 32768
          %279 = vsyncadd %s273, %s278
          %s280 = smul.addr %s27, 512
          %s281 = smul.addr %s26, 1024
          %s282 = sadd.s32 %s280, %s281
          %s283 = smul.addr %s282, 64
          %s284 = scalar_lea.hbm %s4, %s283
          %s285 = sshll.u32 %s276, 4
          %s286 = int_to_ptr.vmem [resolvable:$true] %s285
          %291 = dma.hbm_to_vmem [thread:$0]  %s284, 32768, %s286, %s273, 512, 512, 32
        $region36: #{gaussian_diffusion_forward.21} parent=23 // pred_fallthru
          _
        // Predicated region
        $region37: #{gaussian_diffusion_forward.21} parent=23 // pred_check
          %p292 = pneg %p173
        $region38: #{gaussian_diffusion_forward.21} parent=23 // pred_check_branch
          %294 = sbr.rel (%p292) target = $region40
        $region39: #{gaussian_diffusion_forward.21} parent=23 // pred_region
          %s295 = sand.u32 %s163, 1
          %s296 = scalar_lea.sflag [#allocation7], %s295
          %s297 = sand.u32 %s163, 1
          %s298 = smul.addr %s297, 8
          %s299 = scalar_lea.vmem [#allocation6], %s298
          %s300 = smul.u32 8, %s27
          %s302 = ssub.s32 128, 128
          %303 = vsyncadd %s296, %s302
          %s304 = smul.addr %s300, 16
          %s305 = scalar_lea.hbm %s5, %s304
          %s307 = sshll.u32 %s299, 4
          %s308 = int_to_ptr.vmem [resolvable:$true] %s307
          %310 = dma.hbm_to_vmem [thread:$0]  %s305, 128, %s308, %s296
        $region40: #{gaussian_diffusion_forward.21} parent=23 // pred_fallthru
          _
        // Predicated region
        $region41: #{gaussian_diffusion_forward.21} parent=23 // pred_check
          %p311 = pneg %p199
        $region42: #{gaussian_diffusion_forward.21} parent=23 // pred_check_branch
          %313 = sbr.rel (%p311) target = $region44
        $region43: #{gaussian_diffusion_forward.21} parent=23 // pred_region
          %s314 = smul.u32 8, %s27
          %p315 = scmp.lt.s32.totalorder %s314, 15
          %s316 = scalar_select %p315, %s314, 15
          %s317 = smul.addr %s316, 2
          %s318 = scalar_lea.vmem %s6, %s317
          %s319 = smul.u32 8, %s27
        $region44: #{gaussian_diffusion_forward.21} parent=23 // pred_fallthru
          _
      $region24: #{gaussian_diffusion_forward.21} parent=5 // pred_fallthru
        _
      %p320 = scmp.le.s32.totalorder 1, %s19
      %p321 = scmp.lt.s32.totalorder %s19, 9
      %p322 = pnand %p320, %p321
      %p323 = pneg %p322
      // Predicated region
      $region45: #{gaussian_diffusion_forward.21} parent=5 // pred_check
        _
      $region46: #{gaussian_diffusion_forward.21} parent=5 // pred_check_branch
        %325 = sbr.rel (%p322) target = $region48
      $region47: #{gaussian_diffusion_forward.21} parent=5 // pred_region
        %s326 = ssub.s32 %s19, 1
        %s327 = sand.u32 %s140, 1
        %s328 = scalar_lea.sflag [#allocation5], %s327
        %s329 = sand.u32 %s140, 1
        %s330 = smul.addr %s329, 2048
        %s331 = scalar_lea.vmem [#allocation4], %s330
        // Predicated region
        $region49: #{gaussian_diffusion_forward.21} parent=47 // pred_check
          %p332 = pneg %p153
        $region50: #{gaussian_diffusion_forward.21} parent=47 // pred_check_branch
          %334 = sbr.rel (%p332) target = $region52
        $region51: #{gaussian_diffusion_forward.21} parent=47 // pred_region
          %335 = dma.done %s328, 32768
        $region52: #{gaussian_diffusion_forward.21} parent=47 // pred_fallthru
          _
        %s336 = sand.u32 %s166, 1
        %s337 = scalar_lea.sflag [#allocation7], %s336
        %s338 = sand.u32 %s166, 1
        %s339 = smul.addr %s338, 8
        %s340 = scalar_lea.vmem [#allocation6], %s339
        // Predicated region
        $region53: #{gaussian_diffusion_forward.21} parent=47 // pred_check
          %p341 = pneg %p179
        $region54: #{gaussian_diffusion_forward.21} parent=47 // pred_check_branch
          %343 = sbr.rel (%p341) target = $region56
        $region55: #{gaussian_diffusion_forward.21} parent=47 // pred_region
          %344 = dma.done %s337, 128
        $region56: #{gaussian_diffusion_forward.21} parent=47 // pred_fallthru
          _
        %p345 = pneg %p52
        %p346 = pneg %p49
        %p347 = pneg %p73
        %p348 = pneg %p70
        %s349 = smul.u32 4, %s28
        %p350 = scmp.lt.s32.totalorder %s349, 15
        %s351 = scalar_select %p350, %s349, 15
        %s352 = smul.addr %s351, 2
        %s353 = scalar_lea.vmem %s2, %s352
        %p354 = pneg %p99
        %p355 = pneg %p96
        %s356 = smul.u32 4, %s28
        %p357 = scmp.lt.s32.totalorder %s356, 15
        %s358 = scalar_select %p357, %s356, 15
        %s359 = smul.addr %s358, 2
        %s360 = scalar_lea.vmem %s3, %s359
        %p361 = pneg %p125
        %p362 = pneg %p122
        %s363 = sand.u32 %s140, 1
        %s364 = scalar_lea.sflag [#allocation5], %s363
        %s365 = sand.u32 %s140, 1
        %s366 = smul.addr %s365, 2048
        %s367 = scalar_lea.vmem [#allocation4], %s366
        %p368 = pneg %p153
        %p369 = pneg %p150
        %s370 = sand.u32 %s166, 1
        %s371 = scalar_lea.sflag [#allocation7], %s370
        %s372 = sand.u32 %s166, 1
        %s373 = smul.addr %s372, 8
        %s374 = scalar_lea.vmem [#allocation6], %s373
        %p375 = pneg %p179
        %p376 = pneg %p176
        %s377 = smul.u32 8, %s29
        %p378 = scmp.lt.s32.totalorder %s377, 15
        %s379 = scalar_select %p378, %s377, 15
        %s380 = smul.addr %s379, 2
        %s381 = scalar_lea.vmem %s6, %s380
        %p382 = pneg %p205
        %p383 = pneg %p202
        %p384 = pneg %p226
        %p385 = pneg %p223
        %s386 = smul.u32 4, %s28
        %p387 = scmp.lt.s32.totalorder %s386, 15
        %s388 = scalar_select %p387, %s386, 15
        %s389 = smul.addr %s388, 2
        %s390 = scalar_lea.vmem %s2, %s389
        %s391 = smul.u32 4, %s28
        %s392 = smul.u32 4, %s28
        %p393 = scmp.lt.s32.totalorder %s392, 15
        %s394 = scalar_select %p393, %s392, 15
        %s395 = smul.addr %s394, 2
        %s396 = scalar_lea.vmem %s3, %s395
        %s397 = smul.u32 4, %s28
        %s398 = smul.u32 8, %s29
        %s399 = smul.u32 8, %s29
        %p400 = scmp.lt.s32.totalorder %s399, 15
        %s401 = scalar_select %p400, %s399, 15
        %s402 = smul.addr %s401, 2
        %s403 = scalar_lea.vmem %s6, %s402
        %s404 = smul.u32 8, %s29
        %p405 = scmp.eq.s32.totalorder %s29, 0
        // Predicated region
        $region57: #{gaussian_diffusion_forward.21} parent=47 // pred_check
          %p406 = pneg %p405
        $region58: #{gaussian_diffusion_forward.21} parent=47 // pred_check_branch
          %408 = sbr.rel (%p406) target = $region60
        $region59: #{gaussian_diffusion_forward.21} parent=47 // pred_region
          %v409 = vld [vmem:[%s0] sm:$0x3]
          %v410 = vld [vmem:[%s390] sm:$0xff]
          %412 = vset.pattern.permute.xlu0 0
          %413 = vperm.xlu0 %412, %v409
          %v414 = vpop.permute.xlu0 %413
          %v417 = vcombine.high %v410, %v410
          %v419 = vunpack.c.l.s4 1983009808
          %v420 = vunpack.c.0.s8 %v419
          %v421 = vlaneseq
          %v422 = vshrl.u32 %v421, 7
          %v423 = vsub.s32 %v420, %v422
          %v424 = vrot.slane %v410, %v423
          %v426 = vunpack.c.l.s4 1983009808
          %v427 = vunpack.c.0.s8 %v426
          %v428 = vlaneseq
          %v429 = vshrl.u32 %v428, 7
          %v430 = vsub.s32 %v427, %v429
          %v431 = vrot.slane %v417, %v430
          %v432 = vcombine.high %v424, %v424
          %v433 = vcombine.high %v431, %v431
          %v438 = vmul.f32 %v414, %v424
          %v439 = vmul.f32 %v414, %v432
          %v440 = vmul.f32 %v414, %v431
          %v441 = vmul.f32 %v414, %v433
          %v442 = vld [vmem:[%s1] sm:$0x3]
          %v443 = vld [vmem:[%s396] sm:$0xff]
          %445 = vset.pattern.permute.xlu0 0
          %446 = vperm.xlu0 %445, %v442
          %v447 = vpop.permute.xlu0 %446
          %v450 = vcombine.high %v443, %v443
          %v452 = vunpack.c.l.s4 1983009808
          %v453 = vunpack.c.0.s8 %v452
          %v454 = vlaneseq
          %v455 = vshrl.u32 %v454, 7
          %v456 = vsub.s32 %v453, %v455
          %v457 = vrot.slane %v443, %v456
          %v459 = vunpack.c.l.s4 1983009808
          %v460 = vunpack.c.0.s8 %v459
          %v461 = vlaneseq
          %v462 = vshrl.u32 %v461, 7
          %v463 = vsub.s32 %v460, %v462
          %v464 = vrot.slane %v450, %v463
          %v465 = vcombine.high %v457, %v457
          %v466 = vcombine.high %v464, %v464
          %v471 = vmul.f32 %v447, %v457
          %v472 = vmul.f32 %v447, %v465
          %v473 = vmul.f32 %v447, %v464
          %v474 = vmul.f32 %v447, %v466
          %v475 = vadd.f32 %v438, %v471
          %v476 = vadd.f32 %v439, %v472
          %v477 = vadd.f32 %v440, %v473
          %v478 = vadd.f32 %v441, %v474
          %v479 = vpack.c.bf16 %v475, %v475
          %v480 = vpack.c.bf16 %v476, %v476
          %v481 = vpack.c.bf16 %v477, %v477
          %v482 = vpack.c.bf16 %v478, %v478
          %v487 = vcombine.low %v479, %v480
          %v488 = vcombine.low %v481, %v482
          %v490 = vunpack.c.l.s4 1966171168
          %v491 = vunpack.c.0.s8 %v490
          %v492 = vlaneseq
          %v493 = vshrl.u32 %v492, 7
          %v494 = vsub.s32 %v491, %v493
          %v495 = vrot.slane %v487, %v494
          %v497 = vunpack.c.l.s4 1966171168
          %v498 = vunpack.c.0.s8 %v497
          %v499 = vlaneseq
          %v500 = vshrl.u32 %v499, 7
          %v501 = vsub.s32 %v498, %v500
          %v502 = vrot.slane %v488, %v501
          %v503 = vcombine.low %v495, %v502
          %v505 = vunpack.c.l.s4 1966171168
          %v506 = vunpack.c.0.s8 %v505
          %v507 = vlaneseq
          %v508 = vshrl.u32 %v507, 7
          %v509 = vsub.s32 %v506, %v508
          %v510 = vrot.slane %v503, %v509
          %512 = vst [vmem:[#allocation3] sm:$0xf] %v510
        $region60: #{gaussian_diffusion_forward.21} parent=47 // pred_fallthru
          _
        %s513 = smul.u32 %s29, 1024
        %p514 = scmp.eq.s32.totalorder %s28, 0
        // Predicated region
        $region61: #{gaussian_diffusion_forward.21} parent=47 // pred_check
          %p515 = pneg %p514
        $region62: #{gaussian_diffusion_forward.21} parent=47 // pred_check_branch
          %517 = sbr.rel (%p515) target = $region64
        $region63: #{gaussian_diffusion_forward.21} parent=47 // pred_region
          %s518 = sshra.s32 %s513, 7
          %s519 = sand.u32 %s513, 127
          %s520 = smul.addr %s518, 2
          %s521 = scalar_lea.vmem [#allocation2], %s520
          %522 = vst [vmem:[%s521] sm:$0xff] 0.0
          %523 = vst [vmem:[%s521 + $0x8] sm:$0xff] 0.0
        $region64: #{gaussian_diffusion_forward.21} parent=47 // pred_fallthru
          _
        %s524 = sshra.s32 %s513, 7
        %s525 = sand.u32 %s513, 127
        %s526 = smul.addr %s524, 2
        %s527 = scalar_lea.vmem [#allocation2], %s526
        %v528 = vld [vmem:[%s527] sm:$0xff]
        %v529 = vld [vmem:[%s527 + $0x8] sm:$0xff]
        %v530 = vld [vmem:[#allocation3] sm:$0xf]
        %v531 = vld [vmem:[%s331] sm:$0xff]
        %v532 = vld [vmem:[%s331 + $0x8] sm:$0xff]
        %v533 = vld [vmem:[%s331 + $0x10] sm:$0xff]
        %v534 = vld [vmem:[%s331 + $0x18] sm:$0xff]
        %v535 = vld [vmem:[%s331 + $0x20] sm:$0xff]
        %v536 = vld [vmem:[%s331 + $0x28] sm:$0xff]
        %v537 = vld [vmem:[%s331 + $0x30] sm:$0xff]
        %v538 = vld [vmem:[%s331 + $0x38] sm:$0xff]
        %v539 = vld [vmem:[%s331 + $0x40] sm:$0xff]
        %v540 = vld [vmem:[%s331 + $0x48] sm:$0xff]
        %v541 = vld [vmem:[%s331 + $0x50] sm:$0xff]
        %v542 = vld [vmem:[%s331 + $0x58] sm:$0xff]
        %v543 = vld [vmem:[%s331 + $0x60] sm:$0xff]
        %v544 = vld [vmem:[%s331 + $0x68] sm:$0xff]
        %v545 = vld [vmem:[%s331 + $0x70] sm:$0xff]
        %v546 = vld [vmem:[%s331 + $0x78] sm:$0xff]
        %v547 = vld [vmem:[%s331 + $0x80] sm:$0xff]
        %v548 = vld [vmem:[%s331 + $0x88] sm:$0xff]
        %v549 = vld [vmem:[%s331 + $0x90] sm:$0xff]
        %v550 = vld [vmem:[%s331 + $0x98] sm:$0xff]
        %v551 = vld [vmem:[%s331 + $0xa0] sm:$0xff]
        %v552 = vld [vmem:[%s331 + $0xa8] sm:$0xff]
        %v553 = vld [vmem:[%s331 + $0xb0] sm:$0xff]
        %v554 = vld [vmem:[%s331 + $0xb8] sm:$0xff]
        %v555 = vld [vmem:[%s331 + $0xc0] sm:$0xff]
        %v556 = vld [vmem:[%s331 + $0xc8] sm:$0xff]
        %v557 = vld [vmem:[%s331 + $0xd0] sm:$0xff]
        %v558 = vld [vmem:[%s331 + $0xd8] sm:$0xff]
        %v559 = vld [vmem:[%s331 + $0xe0] sm:$0xff]
        %v560 = vld [vmem:[%s331 + $0xe8] sm:$0xff]
        %v561 = vld [vmem:[%s331 + $0xf0] sm:$0xff]
        %v562 = vld [vmem:[%s331 + $0xf8] sm:$0xff]
        %v563 = vld [vmem:[%s331 + $0x100] sm:$0xff]
        %v564 = vld [vmem:[%s331 + $0x108] sm:$0xff]
        %v565 = vld [vmem:[%s331 + $0x110] sm:$0xff]
        %v566 = vld [vmem:[%s331 + $0x118] sm:$0xff]
        %v567 = vld [vmem:[%s331 + $0x120] sm:$0xff]
        %v568 = vld [vmem:[%s331 + $0x128] sm:$0xff]
        %v569 = vld [vmem:[%s331 + $0x130] sm:$0xff]
        %v570 = vld [vmem:[%s331 + $0x138] sm:$0xff]
        %v571 = vld [vmem:[%s331 + $0x140] sm:$0xff]
        %v572 = vld [vmem:[%s331 + $0x148] sm:$0xff]
        %v573 = vld [vmem:[%s331 + $0x150] sm:$0xff]
        %v574 = vld [vmem:[%s331 + $0x158] sm:$0xff]
        %v575 = vld [vmem:[%s331 + $0x160] sm:$0xff]
        %v576 = vld [vmem:[%s331 + $0x168] sm:$0xff]
        %v577 = vld [vmem:[%s331 + $0x170] sm:$0xff]
        %v578 = vld [vmem:[%s331 + $0x178] sm:$0xff]
        %v579 = vld [vmem:[%s331 + $0x180] sm:$0xff]
        %v580 = vld [vmem:[%s331 + $0x188] sm:$0xff]
        %v581 = vld [vmem:[%s331 + $0x190] sm:$0xff]
        %v582 = vld [vmem:[%s331 + $0x198] sm:$0xff]
        %v583 = vld [vmem:[%s331 + $0x1a0] sm:$0xff]
        %v584 = vld [vmem:[%s331 + $0x1a8] sm:$0xff]
        %v585 = vld [vmem:[%s331 + $0x1b0] sm:$0xff]
        %v586 = vld [vmem:[%s331 + $0x1b8] sm:$0xff]
        %v587 = vld [vmem:[%s331 + $0x1c0] sm:$0xff]
        %v588 = vld [vmem:[%s331 + $0x1c8] sm:$0xff]
        %v589 = vld [vmem:[%s331 + $0x1d0] sm:$0xff]
        %v590 = vld [vmem:[%s331 + $0x1d8] sm:$0xff]
        %v591 = vld [vmem:[%s331 + $0x1e0] sm:$0xff]
        %v592 = vld [vmem:[%s331 + $0x1e8] sm:$0xff]
        %v593 = vld [vmem:[%s331 + $0x1f0] sm:$0xff]
        %v594 = vld [vmem:[%s331 + $0x1f8] sm:$0xff]
        %v595 = vld [vmem:[%s331 + $0x200] sm:$0xff]
        %v596 = vld [vmem:[%s331 + $0x208] sm:$0xff]
        %v597 = vld [vmem:[%s331 + $0x210] sm:$0xff]
        %v598 = vld [vmem:[%s331 + $0x218] sm:$0xff]
        %v599 = vld [vmem:[%s331 + $0x220] sm:$0xff]
        %v600 = vld [vmem:[%s331 + $0x228] sm:$0xff]
        %v601 = vld [vmem:[%s331 + $0x230] sm:$0xff]
        %v602 = vld [vmem:[%s331 + $0x238] sm:$0xff]
        %v603 = vld [vmem:[%s331 + $0x240] sm:$0xff]
        %v604 = vld [vmem:[%s331 + $0x248] sm:$0xff]
        %v605 = vld [vmem:[%s331 + $0x250] sm:$0xff]
        %v606 = vld [vmem:[%s331 + $0x258] sm:$0xff]
        %v607 = vld [vmem:[%s331 + $0x260] sm:$0xff]
        %v608 = vld [vmem:[%s331 + $0x268] sm:$0xff]
        %v609 = vld [vmem:[%s331 + $0x270] sm:$0xff]
        %v610 = vld [vmem:[%s331 + $0x278] sm:$0xff]
        %v611 = vld [vmem:[%s331 + $0x280] sm:$0xff]
        %v612 = vld [vmem:[%s331 + $0x288] sm:$0xff]
        %v613 = vld [vmem:[%s331 + $0x290] sm:$0xff]
        %v614 = vld [vmem:[%s331 + $0x298] sm:$0xff]
        %v615 = vld [vmem:[%s331 + $0x2a0] sm:$0xff]
        %v616 = vld [vmem:[%s331 + $0x2a8] sm:$0xff]
        %v617 = vld [vmem:[%s331 + $0x2b0] sm:$0xff]
        %v618 = vld [vmem:[%s331 + $0x2b8] sm:$0xff]
        %v619 = vld [vmem:[%s331 + $0x2c0] sm:$0xff]
        %v620 = vld [vmem:[%s331 + $0x2c8] sm:$0xff]
        %v621 = vld [vmem:[%s331 + $0x2d0] sm:$0xff]
        %v622 = vld [vmem:[%s331 + $0x2d8] sm:$0xff]
        %v623 = vld [vmem:[%s331 + $0x2e0] sm:$0xff]
        %v624 = vld [vmem:[%s331 + $0x2e8] sm:$0xff]
        %v625 = vld [vmem:[%s331 + $0x2f0] sm:$0xff]
        %v626 = vld [vmem:[%s331 + $0x2f8] sm:$0xff]
        %v627 = vld [vmem:[%s331 + $0x300] sm:$0xff]
        %v628 = vld [vmem:[%s331 + $0x308] sm:$0xff]
        %v629 = vld [vmem:[%s331 + $0x310] sm:$0xff]
        %v630 = vld [vmem:[%s331 + $0x318] sm:$0xff]
        %v631 = vld [vmem:[%s331 + $0x320] sm:$0xff]
        %v632 = vld [vmem:[%s331 + $0x328] sm:$0xff]
        %v633 = vld [vmem:[%s331 + $0x330] sm:$0xff]
        %v634 = vld [vmem:[%s331 + $0x338] sm:$0xff]
        %v635 = vld [vmem:[%s331 + $0x340] sm:$0xff]
        %v636 = vld [vmem:[%s331 + $0x348] sm:$0xff]
        %v637 = vld [vmem:[%s331 + $0x350] sm:$0xff]
        %v638 = vld [vmem:[%s331 + $0x358] sm:$0xff]
        %v639 = vld [vmem:[%s331 + $0x360] sm:$0xff]
        %v640 = vld [vmem:[%s331 + $0x368] sm:$0xff]
        %v641 = vld [vmem:[%s331 + $0x370] sm:$0xff]
        %v642 = vld [vmem:[%s331 + $0x378] sm:$0xff]
        %v643 = vld [vmem:[%s331 + $0x380] sm:$0xff]
        %v644 = vld [vmem:[%s331 + $0x388] sm:$0xff]
        %v645 = vld [vmem:[%s331 + $0x390] sm:$0xff]
        %v646 = vld [vmem:[%s331 + $0x398] sm:$0xff]
        %v647 = vld [vmem:[%s331 + $0x3a0] sm:$0xff]
        %v648 = vld [vmem:[%s331 + $0x3a8] sm:$0xff]
        %v649 = vld [vmem:[%s331 + $0x3b0] sm:$0xff]
        %v650 = vld [vmem:[%s331 + $0x3b8] sm:$0xff]
        %v651 = vld [vmem:[%s331 + $0x3c0] sm:$0xff]
        %v652 = vld [vmem:[%s331 + $0x3c8] sm:$0xff]
        %v653 = vld [vmem:[%s331 + $0x3d0] sm:$0xff]
        %v654 = vld [vmem:[%s331 + $0x3d8] sm:$0xff]
        %v655 = vld [vmem:[%s331 + $0x3e0] sm:$0xff]
        %v656 = vld [vmem:[%s331 + $0x3e8] sm:$0xff]
        %v657 = vld [vmem:[%s331 + $0x3f0] sm:$0xff]
        %v658 = vld [vmem:[%s331 + $0x3f8] sm:$0xff]
        %v659 = vld [vmem:[%s331 + $0x400] sm:$0xff]
        %v660 = vld [vmem:[%s331 + $0x408] sm:$0xff]
        %v661 = vld [vmem:[%s331 + $0x410] sm:$0xff]
        %v662 = vld [vmem:[%s331 + $0x418] sm:$0xff]
        %v663 = vld [vmem:[%s331 + $0x420] sm:$0xff]
        %v664 = vld [vmem:[%s331 + $0x428] sm:$0xff]
        %v665 = vld [vmem:[%s331 + $0x430] sm:$0xff]
        %v666 = vld [vmem:[%s331 + $0x438] sm:$0xff]
        %v667 = vld [vmem:[%s331 + $0x440] sm:$0xff]
        %v668 = vld [vmem:[%s331 + $0x448] sm:$0xff]
        %v669 = vld [vmem:[%s331 + $0x450] sm:$0xff]
        %v670 = vld [vmem:[%s331 + $0x458] sm:$0xff]
        %v671 = vld [vmem:[%s331 + $0x460] sm:$0xff]
        %v672 = vld [vmem:[%s331 + $0x468] sm:$0xff]
        %v673 = vld [vmem:[%s331 + $0x470] sm:$0xff]
        %v674 = vld [vmem:[%s331 + $0x478] sm:$0xff]
        %v675 = vld [vmem:[%s331 + $0x480] sm:$0xff]
        %v676 = vld [vmem:[%s331 + $0x488] sm:$0xff]
        %v677 = vld [vmem:[%s331 + $0x490] sm:$0xff]
        %v678 = vld [vmem:[%s331 + $0x498] sm:$0xff]
        %v679 = vld [vmem:[%s331 + $0x4a0] sm:$0xff]
        %v680 = vld [vmem:[%s331 + $0x4a8] sm:$0xff]
        %v681 = vld [vmem:[%s331 + $0x4b0] sm:$0xff]
        %v682 = vld [vmem:[%s331 + $0x4b8] sm:$0xff]
        %v683 = vld [vmem:[%s331 + $0x4c0] sm:$0xff]
        %v684 = vld [vmem:[%s331 + $0x4c8] sm:$0xff]
        %v685 = vld [vmem:[%s331 + $0x4d0] sm:$0xff]
        %v686 = vld [vmem:[%s331 + $0x4d8] sm:$0xff]
        %v687 = vld [vmem:[%s331 + $0x4e0] sm:$0xff]
        %v688 = vld [vmem:[%s331 + $0x4e8] sm:$0xff]
        %v689 = vld [vmem:[%s331 + $0x4f0] sm:$0xff]
        %v690 = vld [vmem:[%s331 + $0x4f8] sm:$0xff]
        %v691 = vld [vmem:[%s331 + $0x500] sm:$0xff]
        %v692 = vld [vmem:[%s331 + $0x508] sm:$0xff]
        %v693 = vld [vmem:[%s331 + $0x510] sm:$0xff]
        %v694 = vld [vmem:[%s331 + $0x518] sm:$0xff]
        %v695 = vld [vmem:[%s331 + $0x520] sm:$0xff]
        %v696 = vld [vmem:[%s331 + $0x528] sm:$0xff]
        %v697 = vld [vmem:[%s331 + $0x530] sm:$0xff]
        %v698 = vld [vmem:[%s331 + $0x538] sm:$0xff]
        %v699 = vld [vmem:[%s331 + $0x540] sm:$0xff]
        %v700 = vld [vmem:[%s331 + $0x548] sm:$0xff]
        %v701 = vld [vmem:[%s331 + $0x550] sm:$0xff]
        %v702 = vld [vmem:[%s331 + $0x558] sm:$0xff]
        %v703 = vld [vmem:[%s331 + $0x560] sm:$0xff]
        %v704 = vld [vmem:[%s331 + $0x568] sm:$0xff]
        %v705 = vld [vmem:[%s331 + $0x570] sm:$0xff]
        %v706 = vld [vmem:[%s331 + $0x578] sm:$0xff]
        %v707 = vld [vmem:[%s331 + $0x580] sm:$0xff]
        %v708 = vld [vmem:[%s331 + $0x588] sm:$0xff]
        %v709 = vld [vmem:[%s331 + $0x590] sm:$0xff]
        %v710 = vld [vmem:[%s331 + $0x598] sm:$0xff]
        %v711 = vld [vmem:[%s331 + $0x5a0] sm:$0xff]
        %v712 = vld [vmem:[%s331 + $0x5a8] sm:$0xff]
        %v713 = vld [vmem:[%s331 + $0x5b0] sm:$0xff]
        %v714 = vld [vmem:[%s331 + $0x5b8] sm:$0xff]
        %v715 = vld [vmem:[%s331 + $0x5c0] sm:$0xff]
        %v716 = vld [vmem:[%s331 + $0x5c8] sm:$0xff]
        %v717 = vld [vmem:[%s331 + $0x5d0] sm:$0xff]
        %v718 = vld [vmem:[%s331 + $0x5d8] sm:$0xff]
        %v719 = vld [vmem:[%s331 + $0x5e0] sm:$0xff]
        %v720 = vld [vmem:[%s331 + $0x5e8] sm:$0xff]
        %v721 = vld [vmem:[%s331 + $0x5f0] sm:$0xff]
        %v722 = vld [vmem:[%s331 + $0x5f8] sm:$0xff]
        %v723 = vld [vmem:[%s331 + $0x600] sm:$0xff]
        %v724 = vld [vmem:[%s331 + $0x608] sm:$0xff]
        %v725 = vld [vmem:[%s331 + $0x610] sm:$0xff]
        %v726 = vld [vmem:[%s331 + $0x618] sm:$0xff]
        %v727 = vld [vmem:[%s331 + $0x620] sm:$0xff]
        %v728 = vld [vmem:[%s331 + $0x628] sm:$0xff]
        %v729 = vld [vmem:[%s331 + $0x630] sm:$0xff]
        %v730 = vld [vmem:[%s331 + $0x638] sm:$0xff]
        %v731 = vld [vmem:[%s331 + $0x640] sm:$0xff]
        %v732 = vld [vmem:[%s331 + $0x648] sm:$0xff]
        %v733 = vld [vmem:[%s331 + $0x650] sm:$0xff]
        %v734 = vld [vmem:[%s331 + $0x658] sm:$0xff]
        %v735 = vld [vmem:[%s331 + $0x660] sm:$0xff]
        %v736 = vld [vmem:[%s331 + $0x668] sm:$0xff]
        %v737 = vld [vmem:[%s331 + $0x670] sm:$0xff]
        %v738 = vld [vmem:[%s331 + $0x678] sm:$0xff]
        %v739 = vld [vmem:[%s331 + $0x680] sm:$0xff]
        %v740 = vld [vmem:[%s331 + $0x688] sm:$0xff]
        %v741 = vld [vmem:[%s331 + $0x690] sm:$0xff]
        %v742 = vld [vmem:[%s331 + $0x698] sm:$0xff]
        %v743 = vld [vmem:[%s331 + $0x6a0] sm:$0xff]
        %v744 = vld [vmem:[%s331 + $0x6a8] sm:$0xff]
        %v745 = vld [vmem:[%s331 + $0x6b0] sm:$0xff]
        %v746 = vld [vmem:[%s331 + $0x6b8] sm:$0xff]
        %v747 = vld [vmem:[%s331 + $0x6c0] sm:$0xff]
        %v748 = vld [vmem:[%s331 + $0x6c8] sm:$0xff]
        %v749 = vld [vmem:[%s331 + $0x6d0] sm:$0xff]
        %v750 = vld [vmem:[%s331 + $0x6d8] sm:$0xff]
        %v751 = vld [vmem:[%s331 + $0x6e0] sm:$0xff]
        %v752 = vld [vmem:[%s331 + $0x6e8] sm:$0xff]
        %v753 = vld [vmem:[%s331 + $0x6f0] sm:$0xff]
        %v754 = vld [vmem:[%s331 + $0x6f8] sm:$0xff]
        %v755 = vld [vmem:[%s331 + $0x700] sm:$0xff]
        %v756 = vld [vmem:[%s331 + $0x708] sm:$0xff]
        %v757 = vld [vmem:[%s331 + $0x710] sm:$0xff]
        %v758 = vld [vmem:[%s331 + $0x718] sm:$0xff]
        %v759 = vld [vmem:[%s331 + $0x720] sm:$0xff]
        %v760 = vld [vmem:[%s331 + $0x728] sm:$0xff]
        %v761 = vld [vmem:[%s331 + $0x730] sm:$0xff]
        %v762 = vld [vmem:[%s331 + $0x738] sm:$0xff]
        %v763 = vld [vmem:[%s331 + $0x740] sm:$0xff]
        %v764 = vld [vmem:[%s331 + $0x748] sm:$0xff]
        %v765 = vld [vmem:[%s331 + $0x750] sm:$0xff]
        %v766 = vld [vmem:[%s331 + $0x758] sm:$0xff]
        %v767 = vld [vmem:[%s331 + $0x760] sm:$0xff]
        %v768 = vld [vmem:[%s331 + $0x768] sm:$0xff]
        %v769 = vld [vmem:[%s331 + $0x770] sm:$0xff]
        %v770 = vld [vmem:[%s331 + $0x778] sm:$0xff]
        %v771 = vld [vmem:[%s331 + $0x780] sm:$0xff]
        %v772 = vld [vmem:[%s331 + $0x788] sm:$0xff]
        %v773 = vld [vmem:[%s331 + $0x790] sm:$0xff]
        %v774 = vld [vmem:[%s331 + $0x798] sm:$0xff]
        %v775 = vld [vmem:[%s331 + $0x7a0] sm:$0xff]
        %v776 = vld [vmem:[%s331 + $0x7a8] sm:$0xff]
        %v777 = vld [vmem:[%s331 + $0x7b0] sm:$0xff]
        %v778 = vld [vmem:[%s331 + $0x7b8] sm:$0xff]
        %v779 = vld [vmem:[%s331 + $0x7c0] sm:$0xff]
        %v780 = vld [vmem:[%s331 + $0x7c8] sm:$0xff]
        %v781 = vld [vmem:[%s331 + $0x7d0] sm:$0xff]
        %v782 = vld [vmem:[%s331 + $0x7d8] sm:$0xff]
        %v783 = vld [vmem:[%s331 + $0x7e0] sm:$0xff]
        %v784 = vld [vmem:[%s331 + $0x7e8] sm:$0xff]
        %v785 = vld [vmem:[%s331 + $0x7f0] sm:$0xff]
        %v786 = vld [vmem:[%s331 + $0x7f8] sm:$0xff]
        %v789 = vunpack.c.l.s4 1966171168
        %v790 = vunpack.c.0.s8 %v789
        %v791 = vlaneseq
        %v792 = vshrl.u32 %v791, 7
        %v793 = vsub.s32 %v790, %v792
        %v794 = vrot.slane %v530, %v793
        %v795 = vcombine.high %v794, %v794
        %v797 = vunpack.c.l.s4 1966171168
        %v798 = vunpack.c.0.s8 %v797
        %v799 = vlaneseq
        %v800 = vshrl.u32 %v799, 7
        %v801 = vsub.s32 %v798, %v800
        %v802 = vrot.slane %v794, %v801
        %v804 = vunpack.c.l.s4 1966171168
        %v805 = vunpack.c.0.s8 %v804
        %v806 = vlaneseq
        %v807 = vshrl.u32 %v806, 7
        %v808 = vsub.s32 %v805, %v807
        %v809 = vrot.slane %v795, %v808
        %v810 = vcombine.high %v802, %v802
        %v811 = vcombine.high %v809, %v809
        %v1072 = vunpack.c.l.b16 %v531
        %v1073 = vunpack.c.h.b16 %v531
        %v1074 = vunpack.c.l.b16 %v532
        %v1075 = vunpack.c.h.b16 %v532
        %v1076 = vunpack.c.l.b16 %v533
        %v1077 = vunpack.c.h.b16 %v533
        %v1078 = vunpack.c.l.b16 %v534
        %v1079 = vunpack.c.h.b16 %v534
        %v1080 = vunpack.c.l.b16 %v535
        %v1081 = vunpack.c.h.b16 %v535
        %v1082 = vunpack.c.l.b16 %v536
        %v1083 = vunpack.c.h.b16 %v536
        %v1084 = vunpack.c.l.b16 %v537
        %v1085 = vunpack.c.h.b16 %v537
        %v1086 = vunpack.c.l.b16 %v538
        %v1087 = vunpack.c.h.b16 %v538
        %v1088 = vunpack.c.l.b16 %v539
        %v1089 = vunpack.c.h.b16 %v539
        %v1090 = vunpack.c.l.b16 %v540
        %v1091 = vunpack.c.h.b16 %v540
        %v1092 = vunpack.c.l.b16 %v541
        %v1093 = vunpack.c.h.b16 %v541
        %v1094 = vunpack.c.l.b16 %v542
        %v1095 = vunpack.c.h.b16 %v542
        %v1096 = vunpack.c.l.b16 %v543
        %v1097 = vunpack.c.h.b16 %v543
        %v1098 = vunpack.c.l.b16 %v544
        %v1099 = vunpack.c.h.b16 %v544
        %v1100 = vunpack.c.l.b16 %v545
        %v1101 = vunpack.c.h.b16 %v545
        %v1102 = vunpack.c.l.b16 %v546
        %v1103 = vunpack.c.h.b16 %v546
        %v1104 = vunpack.c.l.b16 %v547
        %v1105 = vunpack.c.h.b16 %v547
        %v1106 = vunpack.c.l.b16 %v548
        %v1107 = vunpack.c.h.b16 %v548
        %v1108 = vunpack.c.l.b16 %v549
        %v1109 = vunpack.c.h.b16 %v549
        %v1110 = vunpack.c.l.b16 %v550
        %v1111 = vunpack.c.h.b16 %v550
        %v1112 = vunpack.c.l.b16 %v551
        %v1113 = vunpack.c.h.b16 %v551
        %v1114 = vunpack.c.l.b16 %v552
        %v1115 = vunpack.c.h.b16 %v552
        %v1116 = vunpack.c.l.b16 %v553
        %v1117 = vunpack.c.h.b16 %v553
        %v1118 = vunpack.c.l.b16 %v554
        %v1119 = vunpack.c.h.b16 %v554
        %v1120 = vunpack.c.l.b16 %v555
        %v1121 = vunpack.c.h.b16 %v555
        %v1122 = vunpack.c.l.b16 %v556
        %v1123 = vunpack.c.h.b16 %v556
        %v1124 = vunpack.c.l.b16 %v557
        %v1125 = vunpack.c.h.b16 %v557
        %v1126 = vunpack.c.l.b16 %v558
        %v1127 = vunpack.c.h.b16 %v558
        %v1128 = vunpack.c.l.b16 %v559
        %v1129 = vunpack.c.h.b16 %v559
        %v1130 = vunpack.c.l.b16 %v560
        %v1131 = vunpack.c.h.b16 %v560
        %v1132 = vunpack.c.l.b16 %v561
        %v1133 = vunpack.c.h.b16 %v561
        %v1134 = vunpack.c.l.b16 %v562
        %v1135 = vunpack.c.h.b16 %v562
        %v1136 = vunpack.c.l.b16 %v563
        %v1137 = vunpack.c.h.b16 %v563
        %v1138 = vunpack.c.l.b16 %v564
        %v1139 = vunpack.c.h.b16 %v564
        %v1140 = vunpack.c.l.b16 %v565
        %v1141 = vunpack.c.h.b16 %v565
        %v1142 = vunpack.c.l.b16 %v566
        %v1143 = vunpack.c.h.b16 %v566
        %v1144 = vunpack.c.l.b16 %v567
        %v1145 = vunpack.c.h.b16 %v567
        %v1146 = vunpack.c.l.b16 %v568
        %v1147 = vunpack.c.h.b16 %v568
        %v1148 = vunpack.c.l.b16 %v569
        %v1149 = vunpack.c.h.b16 %v569
        %v1150 = vunpack.c.l.b16 %v570
        %v1151 = vunpack.c.h.b16 %v570
        %v1152 = vunpack.c.l.b16 %v571
        %v1153 = vunpack.c.h.b16 %v571
        %v1154 = vunpack.c.l.b16 %v572
        %v1155 = vunpack.c.h.b16 %v572
        %v1156 = vunpack.c.l.b16 %v573
        %v1157 = vunpack.c.h.b16 %v573
        %v1158 = vunpack.c.l.b16 %v574
        %v1159 = vunpack.c.h.b16 %v574
        %v1160 = vunpack.c.l.b16 %v575
        %v1161 = vunpack.c.h.b16 %v575
        %v1162 = vunpack.c.l.b16 %v576
        %v1163 = vunpack.c.h.b16 %v576
        %v1164 = vunpack.c.l.b16 %v577
        %v1165 = vunpack.c.h.b16 %v577
        %v1166 = vunpack.c.l.b16 %v578
        %v1167 = vunpack.c.h.b16 %v578
        %v1168 = vunpack.c.l.b16 %v579
        %v1169 = vunpack.c.h.b16 %v579
        %v1170 = vunpack.c.l.b16 %v580
        %v1171 = vunpack.c.h.b16 %v580
        %v1172 = vunpack.c.l.b16 %v581
        %v1173 = vunpack.c.h.b16 %v581
        %v1174 = vunpack.c.l.b16 %v582
        %v1175 = vunpack.c.h.b16 %v582
        %v1176 = vunpack.c.l.b16 %v583
        %v1177 = vunpack.c.h.b16 %v583
        %v1178 = vunpack.c.l.b16 %v584
        %v1179 = vunpack.c.h.b16 %v584
        %v1180 = vunpack.c.l.b16 %v585
        %v1181 = vunpack.c.h.b16 %v585
        %v1182 = vunpack.c.l.b16 %v586
        %v1183 = vunpack.c.h.b16 %v586
        %v1184 = vunpack.c.l.b16 %v587
        %v1185 = vunpack.c.h.b16 %v587
        %v1186 = vunpack.c.l.b16 %v588
        %v1187 = vunpack.c.h.b16 %v588
        %v1188 = vunpack.c.l.b16 %v589
        %v1189 = vunpack.c.h.b16 %v589
        %v1190 = vunpack.c.l.b16 %v590
        %v1191 = vunpack.c.h.b16 %v590
        %v1192 = vunpack.c.l.b16 %v591
        %v1193 = vunpack.c.h.b16 %v591
        %v1194 = vunpack.c.l.b16 %v592
        %v1195 = vunpack.c.h.b16 %v592
        %v1196 = vunpack.c.l.b16 %v593
        %v1197 = vunpack.c.h.b16 %v593
        %v1198 = vunpack.c.l.b16 %v594
        %v1199 = vunpack.c.h.b16 %v594
        %v1200 = vunpack.c.l.b16 %v595
        %v1201 = vunpack.c.h.b16 %v595
        %v1202 = vunpack.c.l.b16 %v596
        %v1203 = vunpack.c.h.b16 %v596
        %v1204 = vunpack.c.l.b16 %v597
        %v1205 = vunpack.c.h.b16 %v597
        %v1206 = vunpack.c.l.b16 %v598
        %v1207 = vunpack.c.h.b16 %v598
        %v1208 = vunpack.c.l.b16 %v599
        %v1209 = vunpack.c.h.b16 %v599
        %v1210 = vunpack.c.l.b16 %v600
        %v1211 = vunpack.c.h.b16 %v600
        %v1212 = vunpack.c.l.b16 %v601
        %v1213 = vunpack.c.h.b16 %v601
        %v1214 = vunpack.c.l.b16 %v602
        %v1215 = vunpack.c.h.b16 %v602
        %v1216 = vunpack.c.l.b16 %v603
        %v1217 = vunpack.c.h.b16 %v603
        %v1218 = vunpack.c.l.b16 %v604
        %v1219 = vunpack.c.h.b16 %v604
        %v1220 = vunpack.c.l.b16 %v605
        %v1221 = vunpack.c.h.b16 %v605
        %v1222 = vunpack.c.l.b16 %v606
        %v1223 = vunpack.c.h.b16 %v606
        %v1224 = vunpack.c.l.b16 %v607
        %v1225 = vunpack.c.h.b16 %v607
        %v1226 = vunpack.c.l.b16 %v608
        %v1227 = vunpack.c.h.b16 %v608
        %v1228 = vunpack.c.l.b16 %v609
        %v1229 = vunpack.c.h.b16 %v609
        %v1230 = vunpack.c.l.b16 %v610
        %v1231 = vunpack.c.h.b16 %v610
        %v1232 = vunpack.c.l.b16 %v611
        %v1233 = vunpack.c.h.b16 %v611
        %v1234 = vunpack.c.l.b16 %v612
        %v1235 = vunpack.c.h.b16 %v612
        %v1236 = vunpack.c.l.b16 %v613
        %v1237 = vunpack.c.h.b16 %v613
        %v1238 = vunpack.c.l.b16 %v614
        %v1239 = vunpack.c.h.b16 %v614
        %v1240 = vunpack.c.l.b16 %v615
        %v1241 = vunpack.c.h.b16 %v615
        %v1242 = vunpack.c.l.b16 %v616
        %v1243 = vunpack.c.h.b16 %v616
        %v1244 = vunpack.c.l.b16 %v617
        %v1245 = vunpack.c.h.b16 %v617
        %v1246 = vunpack.c.l.b16 %v618
        %v1247 = vunpack.c.h.b16 %v618
        %v1248 = vunpack.c.l.b16 %v619
        %v1249 = vunpack.c.h.b16 %v619
        %v1250 = vunpack.c.l.b16 %v620
        %v1251 = vunpack.c.h.b16 %v620
        %v1252 = vunpack.c.l.b16 %v621
        %v1253 = vunpack.c.h.b16 %v621
        %v1254 = vunpack.c.l.b16 %v622
        %v1255 = vunpack.c.h.b16 %v622
        %v1256 = vunpack.c.l.b16 %v623
        %v1257 = vunpack.c.h.b16 %v623
        %v1258 = vunpack.c.l.b16 %v624
        %v1259 = vunpack.c.h.b16 %v624
        %v1260 = vunpack.c.l.b16 %v625
        %v1261 = vunpack.c.h.b16 %v625
        %v1262 = vunpack.c.l.b16 %v626
        %v1263 = vunpack.c.h.b16 %v626
        %v1264 = vunpack.c.l.b16 %v627
        %v1265 = vunpack.c.h.b16 %v627
        %v1266 = vunpack.c.l.b16 %v628
        %v1267 = vunpack.c.h.b16 %v628
        %v1268 = vunpack.c.l.b16 %v629
        %v1269 = vunpack.c.h.b16 %v629
        %v1270 = vunpack.c.l.b16 %v630
        %v1271 = vunpack.c.h.b16 %v630
        %v1272 = vunpack.c.l.b16 %v631
        %v1273 = vunpack.c.h.b16 %v631
        %v1274 = vunpack.c.l.b16 %v632
        %v1275 = vunpack.c.h.b16 %v632
        %v1276 = vunpack.c.l.b16 %v633
        %v1277 = vunpack.c.h.b16 %v633
        %v1278 = vunpack.c.l.b16 %v634
        %v1279 = vunpack.c.h.b16 %v634
        %v1280 = vunpack.c.l.b16 %v635
        %v1281 = vunpack.c.h.b16 %v635
        %v1282 = vunpack.c.l.b16 %v636
        %v1283 = vunpack.c.h.b16 %v636
        %v1284 = vunpack.c.l.b16 %v637
        %v1285 = vunpack.c.h.b16 %v637
        %v1286 = vunpack.c.l.b16 %v638
        %v1287 = vunpack.c.h.b16 %v638
        %v1288 = vunpack.c.l.b16 %v639
        %v1289 = vunpack.c.h.b16 %v639
        %v1290 = vunpack.c.l.b16 %v640
        %v1291 = vunpack.c.h.b16 %v640
        %v1292 = vunpack.c.l.b16 %v641
        %v1293 = vunpack.c.h.b16 %v641
        %v1294 = vunpack.c.l.b16 %v642
        %v1295 = vunpack.c.h.b16 %v642
        %v1296 = vunpack.c.l.b16 %v643
        %v1297 = vunpack.c.h.b16 %v643
        %v1298 = vunpack.c.l.b16 %v644
        %v1299 = vunpack.c.h.b16 %v644
        %v1300 = vunpack.c.l.b16 %v645
        %v1301 = vunpack.c.h.b16 %v645
        %v1302 = vunpack.c.l.b16 %v646
        %v1303 = vunpack.c.h.b16 %v646
        %v1304 = vunpack.c.l.b16 %v647
        %v1305 = vunpack.c.h.b16 %v647
        %v1306 = vunpack.c.l.b16 %v648
        %v1307 = vunpack.c.h.b16 %v648
        %v1308 = vunpack.c.l.b16 %v649
        %v1309 = vunpack.c.h.b16 %v649
        %v1310 = vunpack.c.l.b16 %v650
        %v1311 = vunpack.c.h.b16 %v650
        %v1312 = vunpack.c.l.b16 %v651
        %v1313 = vunpack.c.h.b16 %v651
        %v1314 = vunpack.c.l.b16 %v652
        %v1315 = vunpack.c.h.b16 %v652
        %v1316 = vunpack.c.l.b16 %v653
        %v1317 = vunpack.c.h.b16 %v653
        %v1318 = vunpack.c.l.b16 %v654
        %v1319 = vunpack.c.h.b16 %v654
        %v1320 = vunpack.c.l.b16 %v655
        %v1321 = vunpack.c.h.b16 %v655
        %v1322 = vunpack.c.l.b16 %v656
        %v1323 = vunpack.c.h.b16 %v656
        %v1324 = vunpack.c.l.b16 %v657
        %v1325 = vunpack.c.h.b16 %v657
        %v1326 = vunpack.c.l.b16 %v658
        %v1327 = vunpack.c.h.b16 %v658
        %v1328 = vunpack.c.l.b16 %v659
        %v1329 = vunpack.c.h.b16 %v659
        %v1330 = vunpack.c.l.b16 %v660
        %v1331 = vunpack.c.h.b16 %v660
        %v1332 = vunpack.c.l.b16 %v661
        %v1333 = vunpack.c.h.b16 %v661
        %v1334 = vunpack.c.l.b16 %v662
        %v1335 = vunpack.c.h.b16 %v662
        %v1336 = vunpack.c.l.b16 %v663
        %v1337 = vunpack.c.h.b16 %v663
        %v1338 = vunpack.c.l.b16 %v664
        %v1339 = vunpack.c.h.b16 %v664
        %v1340 = vunpack.c.l.b16 %v665
        %v1341 = vunpack.c.h.b16 %v665
        %v1342 = vunpack.c.l.b16 %v666
        %v1343 = vunpack.c.h.b16 %v666
        %v1344 = vunpack.c.l.b16 %v667
        %v1345 = vunpack.c.h.b16 %v667
        %v1346 = vunpack.c.l.b16 %v668
        %v1347 = vunpack.c.h.b16 %v668
        %v1348 = vunpack.c.l.b16 %v669
        %v1349 = vunpack.c.h.b16 %v669
        %v1350 = vunpack.c.l.b16 %v670
        %v1351 = vunpack.c.h.b16 %v670
        %v1352 = vunpack.c.l.b16 %v671
        %v1353 = vunpack.c.h.b16 %v671
        %v1354 = vunpack.c.l.b16 %v672
        %v1355 = vunpack.c.h.b16 %v672
        %v1356 = vunpack.c.l.b16 %v673
        %v1357 = vunpack.c.h.b16 %v673
        %v1358 = vunpack.c.l.b16 %v674
        %v1359 = vunpack.c.h.b16 %v674
        %v1360 = vunpack.c.l.b16 %v675
        %v1361 = vunpack.c.h.b16 %v675
        %v1362 = vunpack.c.l.b16 %v676
        %v1363 = vunpack.c.h.b16 %v676
        %v1364 = vunpack.c.l.b16 %v677
        %v1365 = vunpack.c.h.b16 %v677
        %v1366 = vunpack.c.l.b16 %v678
        %v1367 = vunpack.c.h.b16 %v678
        %v1368 = vunpack.c.l.b16 %v679
        %v1369 = vunpack.c.h.b16 %v679
        %v1370 = vunpack.c.l.b16 %v680
        %v1371 = vunpack.c.h.b16 %v680
        %v1372 = vunpack.c.l.b16 %v681
        %v1373 = vunpack.c.h.b16 %v681
        %v1374 = vunpack.c.l.b16 %v682
        %v1375 = vunpack.c.h.b16 %v682
        %v1376 = vunpack.c.l.b16 %v683
        %v1377 = vunpack.c.h.b16 %v683
        %v1378 = vunpack.c.l.b16 %v684
        %v1379 = vunpack.c.h.b16 %v684
        %v1380 = vunpack.c.l.b16 %v685
        %v1381 = vunpack.c.h.b16 %v685
        %v1382 = vunpack.c.l.b16 %v686
        %v1383 = vunpack.c.h.b16 %v686
        %v1384 = vunpack.c.l.b16 %v687
        %v1385 = vunpack.c.h.b16 %v687
        %v1386 = vunpack.c.l.b16 %v688
        %v1387 = vunpack.c.h.b16 %v688
        %v1388 = vunpack.c.l.b16 %v689
        %v1389 = vunpack.c.h.b16 %v689
        %v1390 = vunpack.c.l.b16 %v690
        %v1391 = vunpack.c.h.b16 %v690
        %v1392 = vunpack.c.l.b16 %v691
        %v1393 = vunpack.c.h.b16 %v691
        %v1394 = vunpack.c.l.b16 %v692
        %v1395 = vunpack.c.h.b16 %v692
        %v1396 = vunpack.c.l.b16 %v693
        %v1397 = vunpack.c.h.b16 %v693
        %v1398 = vunpack.c.l.b16 %v694
        %v1399 = vunpack.c.h.b16 %v694
        %v1400 = vunpack.c.l.b16 %v695
        %v1401 = vunpack.c.h.b16 %v695
        %v1402 = vunpack.c.l.b16 %v696
        %v1403 = vunpack.c.h.b16 %v696
        %v1404 = vunpack.c.l.b16 %v697
        %v1405 = vunpack.c.h.b16 %v697
        %v1406 = vunpack.c.l.b16 %v698
        %v1407 = vunpack.c.h.b16 %v698
        %v1408 = vunpack.c.l.b16 %v699
        %v1409 = vunpack.c.h.b16 %v699
        %v1410 = vunpack.c.l.b16 %v700
        %v1411 = vunpack.c.h.b16 %v700
        %v1412 = vunpack.c.l.b16 %v701
        %v1413 = vunpack.c.h.b16 %v701
        %v1414 = vunpack.c.l.b16 %v702
        %v1415 = vunpack.c.h.b16 %v702
        %v1416 = vunpack.c.l.b16 %v703
        %v1417 = vunpack.c.h.b16 %v703
        %v1418 = vunpack.c.l.b16 %v704
        %v1419 = vunpack.c.h.b16 %v704
        %v1420 = vunpack.c.l.b16 %v705
        %v1421 = vunpack.c.h.b16 %v705
        %v1422 = vunpack.c.l.b16 %v706
        %v1423 = vunpack.c.h.b16 %v706
        %v1424 = vunpack.c.l.b16 %v707
        %v1425 = vunpack.c.h.b16 %v707
        %v1426 = vunpack.c.l.b16 %v708
        %v1427 = vunpack.c.h.b16 %v708
        %v1428 = vunpack.c.l.b16 %v709
        %v1429 = vunpack.c.h.b16 %v709
        %v1430 = vunpack.c.l.b16 %v710
        %v1431 = vunpack.c.h.b16 %v710
        %v1432 = vunpack.c.l.b16 %v711
        %v1433 = vunpack.c.h.b16 %v711
        %v1434 = vunpack.c.l.b16 %v712
        %v1435 = vunpack.c.h.b16 %v712
        %v1436 = vunpack.c.l.b16 %v713
        %v1437 = vunpack.c.h.b16 %v713
        %v1438 = vunpack.c.l.b16 %v714
        %v1439 = vunpack.c.h.b16 %v714
        %v1440 = vunpack.c.l.b16 %v715
        %v1441 = vunpack.c.h.b16 %v715
        %v1442 = vunpack.c.l.b16 %v716
        %v1443 = vunpack.c.h.b16 %v716
        %v1444 = vunpack.c.l.b16 %v717
        %v1445 = vunpack.c.h.b16 %v717
        %v1446 = vunpack.c.l.b16 %v718
        %v1447 = vunpack.c.h.b16 %v718
        %v1448 = vunpack.c.l.b16 %v719
        %v1449 = vunpack.c.h.b16 %v719
        %v1450 = vunpack.c.l.b16 %v720
        %v1451 = vunpack.c.h.b16 %v720
        %v1452 = vunpack.c.l.b16 %v721
        %v1453 = vunpack.c.h.b16 %v721
        %v1454 = vunpack.c.l.b16 %v722
        %v1455 = vunpack.c.h.b16 %v722
        %v1456 = vunpack.c.l.b16 %v723
        %v1457 = vunpack.c.h.b16 %v723
        %v1458 = vunpack.c.l.b16 %v724
        %v1459 = vunpack.c.h.b16 %v724
        %v1460 = vunpack.c.l.b16 %v725
        %v1461 = vunpack.c.h.b16 %v725
        %v1462 = vunpack.c.l.b16 %v726
        %v1463 = vunpack.c.h.b16 %v726
        %v1464 = vunpack.c.l.b16 %v727
        %v1465 = vunpack.c.h.b16 %v727
        %v1466 = vunpack.c.l.b16 %v728
        %v1467 = vunpack.c.h.b16 %v728
        %v1468 = vunpack.c.l.b16 %v729
        %v1469 = vunpack.c.h.b16 %v729
        %v1470 = vunpack.c.l.b16 %v730
        %v1471 = vunpack.c.h.b16 %v730
        %v1472 = vunpack.c.l.b16 %v731
        %v1473 = vunpack.c.h.b16 %v731
        %v1474 = vunpack.c.l.b16 %v732
        %v1475 = vunpack.c.h.b16 %v732
        %v1476 = vunpack.c.l.b16 %v733
        %v1477 = vunpack.c.h.b16 %v733
        %v1478 = vunpack.c.l.b16 %v734
        %v1479 = vunpack.c.h.b16 %v734
        %v1480 = vunpack.c.l.b16 %v735
        %v1481 = vunpack.c.h.b16 %v735
        %v1482 = vunpack.c.l.b16 %v736
        %v1483 = vunpack.c.h.b16 %v736
        %v1484 = vunpack.c.l.b16 %v737
        %v1485 = vunpack.c.h.b16 %v737
        %v1486 = vunpack.c.l.b16 %v738
        %v1487 = vunpack.c.h.b16 %v738
        %v1488 = vunpack.c.l.b16 %v739
        %v1489 = vunpack.c.h.b16 %v739
        %v1490 = vunpack.c.l.b16 %v740
        %v1491 = vunpack.c.h.b16 %v740
        %v1492 = vunpack.c.l.b16 %v741
        %v1493 = vunpack.c.h.b16 %v741
        %v1494 = vunpack.c.l.b16 %v742
        %v1495 = vunpack.c.h.b16 %v742
        %v1496 = vunpack.c.l.b16 %v743
        %v1497 = vunpack.c.h.b16 %v743
        %v1498 = vunpack.c.l.b16 %v744
        %v1499 = vunpack.c.h.b16 %v744
        %v1500 = vunpack.c.l.b16 %v745
        %v1501 = vunpack.c.h.b16 %v745
        %v1502 = vunpack.c.l.b16 %v746
        %v1503 = vunpack.c.h.b16 %v746
        %v1504 = vunpack.c.l.b16 %v747
        %v1505 = vunpack.c.h.b16 %v747
        %v1506 = vunpack.c.l.b16 %v748
        %v1507 = vunpack.c.h.b16 %v748
        %v1508 = vunpack.c.l.b16 %v749
        %v1509 = vunpack.c.h.b16 %v749
        %v1510 = vunpack.c.l.b16 %v750
        %v1511 = vunpack.c.h.b16 %v750
        %v1512 = vunpack.c.l.b16 %v751
        %v1513 = vunpack.c.h.b16 %v751
        %v1514 = vunpack.c.l.b16 %v752
        %v1515 = vunpack.c.h.b16 %v752
        %v1516 = vunpack.c.l.b16 %v753
        %v1517 = vunpack.c.h.b16 %v753
        %v1518 = vunpack.c.l.b16 %v754
        %v1519 = vunpack.c.h.b16 %v754
        %v1520 = vunpack.c.l.b16 %v755
        %v1521 = vunpack.c.h.b16 %v755
        %v1522 = vunpack.c.l.b16 %v756
        %v1523 = vunpack.c.h.b16 %v756
        %v1524 = vunpack.c.l.b16 %v757
        %v1525 = vunpack.c.h.b16 %v757
        %v1526 = vunpack.c.l.b16 %v758
        %v1527 = vunpack.c.h.b16 %v758
        %v1528 = vunpack.c.l.b16 %v759
        %v1529 = vunpack.c.h.b16 %v759
        %v1530 = vunpack.c.l.b16 %v760
        %v1531 = vunpack.c.h.b16 %v760
        %v1532 = vunpack.c.l.b16 %v761
        %v1533 = vunpack.c.h.b16 %v761
        %v1534 = vunpack.c.l.b16 %v762
        %v1535 = vunpack.c.h.b16 %v762
        %v1536 = vunpack.c.l.b16 %v763
        %v1537 = vunpack.c.h.b16 %v763
        %v1538 = vunpack.c.l.b16 %v764
        %v1539 = vunpack.c.h.b16 %v764
        %v1540 = vunpack.c.l.b16 %v765
        %v1541 = vunpack.c.h.b16 %v765
        %v1542 = vunpack.c.l.b16 %v766
        %v1543 = vunpack.c.h.b16 %v766
        %v1544 = vunpack.c.l.b16 %v767
        %v1545 = vunpack.c.h.b16 %v767
        %v1546 = vunpack.c.l.b16 %v768
        %v1547 = vunpack.c.h.b16 %v768
        %v1548 = vunpack.c.l.b16 %v769
        %v1549 = vunpack.c.h.b16 %v769
        %v1550 = vunpack.c.l.b16 %v770
        %v1551 = vunpack.c.h.b16 %v770
        %v1552 = vunpack.c.l.b16 %v771
        %v1553 = vunpack.c.h.b16 %v771
        %v1554 = vunpack.c.l.b16 %v772
        %v1555 = vunpack.c.h.b16 %v772
        %v1556 = vunpack.c.l.b16 %v773
        %v1557 = vunpack.c.h.b16 %v773
        %v1558 = vunpack.c.l.b16 %v774
        %v1559 = vunpack.c.h.b16 %v774
        %v1560 = vunpack.c.l.b16 %v775
        %v1561 = vunpack.c.h.b16 %v775
        %v1562 = vunpack.c.l.b16 %v776
        %v1563 = vunpack.c.h.b16 %v776
        %v1564 = vunpack.c.l.b16 %v777
        %v1565 = vunpack.c.h.b16 %v777
        %v1566 = vunpack.c.l.b16 %v778
        %v1567 = vunpack.c.h.b16 %v778
        %v1568 = vunpack.c.l.b16 %v779
        %v1569 = vunpack.c.h.b16 %v779
        %v1570 = vunpack.c.l.b16 %v780
        %v1571 = vunpack.c.h.b16 %v780
        %v1572 = vunpack.c.l.b16 %v781
        %v1573 = vunpack.c.h.b16 %v781
        %v1574 = vunpack.c.l.b16 %v782
        %v1575 = vunpack.c.h.b16 %v782
        %v1576 = vunpack.c.l.b16 %v783
        %v1577 = vunpack.c.h.b16 %v783
        %v1578 = vunpack.c.l.b16 %v784
        %v1579 = vunpack.c.h.b16 %v784
        %v1580 = vunpack.c.l.b16 %v785
        %v1581 = vunpack.c.h.b16 %v785
        %v1582 = vunpack.c.l.b16 %v786
        %v1583 = vunpack.c.h.b16 %v786
        %v1584 = vpack.c.b16 %v1080, %v1072
        %v1585 = vpack.c.b16 %v1081, %v1073
        %v1586 = vpack.c.b16 %v1082, %v1074
        %v1587 = vpack.c.b16 %v1083, %v1075
        %v1588 = vpack.c.b16 %v1084, %v1076
        %v1589 = vpack.c.b16 %v1085, %v1077
        %v1590 = vpack.c.b16 %v1086, %v1078
        %v1591 = vpack.c.b16 %v1087, %v1079
        %v1592 = vpack.c.b16 %v1096, %v1088
        %v1593 = vpack.c.b16 %v1097, %v1089
        %v1594 = vpack.c.b16 %v1098, %v1090
        %v1595 = vpack.c.b16 %v1099, %v1091
        %v1596 = vpack.c.b16 %v1100, %v1092
        %v1597 = vpack.c.b16 %v1101, %v1093
        %v1598 = vpack.c.b16 %v1102, %v1094
        %v1599 = vpack.c.b16 %v1103, %v1095
        %v1600 = vpack.c.b16 %v1112, %v1104
        %v1601 = vpack.c.b16 %v1113, %v1105
        %v1602 = vpack.c.b16 %v1114, %v1106
        %v1603 = vpack.c.b16 %v1115, %v1107
        %v1604 = vpack.c.b16 %v1116, %v1108
        %v1605 = vpack.c.b16 %v1117, %v1109
        %v1606 = vpack.c.b16 %v1118, %v1110
        %v1607 = vpack.c.b16 %v1119, %v1111
        %v1608 = vpack.c.b16 %v1128, %v1120
        %v1609 = vpack.c.b16 %v1129, %v1121
        %v1610 = vpack.c.b16 %v1130, %v1122
        %v1611 = vpack.c.b16 %v1131, %v1123
        %v1612 = vpack.c.b16 %v1132, %v1124
        %v1613 = vpack.c.b16 %v1133, %v1125
        %v1614 = vpack.c.b16 %v1134, %v1126
        %v1615 = vpack.c.b16 %v1135, %v1127
        %v1616 = vpack.c.b16 %v1144, %v1136
        %v1617 = vpack.c.b16 %v1145, %v1137
        %v1618 = vpack.c.b16 %v1146, %v1138
        %v1619 = vpack.c.b16 %v1147, %v1139
        %v1620 = vpack.c.b16 %v1148, %v1140
        %v1621 = vpack.c.b16 %v1149, %v1141
        %v1622 = vpack.c.b16 %v1150, %v1142
        %v1623 = vpack.c.b16 %v1151, %v1143
        %v1624 = vpack.c.b16 %v1160, %v1152
        %v1625 = vpack.c.b16 %v1161, %v1153
        %v1626 = vpack.c.b16 %v1162, %v1154
        %v1627 = vpack.c.b16 %v1163, %v1155
        %v1628 = vpack.c.b16 %v1164, %v1156
        %v1629 = vpack.c.b16 %v1165, %v1157
        %v1630 = vpack.c.b16 %v1166, %v1158
        %v1631 = vpack.c.b16 %v1167, %v1159
        %v1632 = vpack.c.b16 %v1176, %v1168
        %v1633 = vpack.c.b16 %v1177, %v1169
        %v1634 = vpack.c.b16 %v1178, %v1170
        %v1635 = vpack.c.b16 %v1179, %v1171
        %v1636 = vpack.c.b16 %v1180, %v1172
        %v1637 = vpack.c.b16 %v1181, %v1173
        %v1638 = vpack.c.b16 %v1182, %v1174
        %v1639 = vpack.c.b16 %v1183, %v1175
        %v1640 = vpack.c.b16 %v1192, %v1184
        %v1641 = vpack.c.b16 %v1193, %v1185
        %v1642 = vpack.c.b16 %v1194, %v1186
        %v1643 = vpack.c.b16 %v1195, %v1187
        %v1644 = vpack.c.b16 %v1196, %v1188
        %v1645 = vpack.c.b16 %v1197, %v1189
        %v1646 = vpack.c.b16 %v1198, %v1190
        %v1647 = vpack.c.b16 %v1199, %v1191
        %v1648 = vpack.c.b16 %v1208, %v1200
        %v1649 = vpack.c.b16 %v1209, %v1201
        %v1650 = vpack.c.b16 %v1210, %v1202
        %v1651 = vpack.c.b16 %v1211, %v1203
        %v1652 = vpack.c.b16 %v1212, %v1204
        %v1653 = vpack.c.b16 %v1213, %v1205
        %v1654 = vpack.c.b16 %v1214, %v1206
        %v1655 = vpack.c.b16 %v1215, %v1207
        %v1656 = vpack.c.b16 %v1224, %v1216
        %v1657 = vpack.c.b16 %v1225, %v1217
        %v1658 = vpack.c.b16 %v1226, %v1218
        %v1659 = vpack.c.b16 %v1227, %v1219
        %v1660 = vpack.c.b16 %v1228, %v1220
        %v1661 = vpack.c.b16 %v1229, %v1221
        %v1662 = vpack.c.b16 %v1230, %v1222
        %v1663 = vpack.c.b16 %v1231, %v1223
        %v1664 = vpack.c.b16 %v1240, %v1232
        %v1665 = vpack.c.b16 %v1241, %v1233
        %v1666 = vpack.c.b16 %v1242, %v1234
        %v1667 = vpack.c.b16 %v1243, %v1235
        %v1668 = vpack.c.b16 %v1244, %v1236
        %v1669 = vpack.c.b16 %v1245, %v1237
        %v1670 = vpack.c.b16 %v1246, %v1238
        %v1671 = vpack.c.b16 %v1247, %v1239
        %v1672 = vpack.c.b16 %v1256, %v1248
        %v1673 = vpack.c.b16 %v1257, %v1249
        %v1674 = vpack.c.b16 %v1258, %v1250
        %v1675 = vpack.c.b16 %v1259, %v1251
        %v1676 = vpack.c.b16 %v1260, %v1252
        %v1677 = vpack.c.b16 %v1261, %v1253
        %v1678 = vpack.c.b16 %v1262, %v1254
        %v1679 = vpack.c.b16 %v1263, %v1255
        %v1680 = vpack.c.b16 %v1272, %v1264
        %v1681 = vpack.c.b16 %v1273, %v1265
        %v1682 = vpack.c.b16 %v1274, %v1266
        %v1683 = vpack.c.b16 %v1275, %v1267
        %v1684 = vpack.c.b16 %v1276, %v1268
        %v1685 = vpack.c.b16 %v1277, %v1269
        %v1686 = vpack.c.b16 %v1278, %v1270
        %v1687 = vpack.c.b16 %v1279, %v1271
        %v1688 = vpack.c.b16 %v1288, %v1280
        %v1689 = vpack.c.b16 %v1289, %v1281
        %v1690 = vpack.c.b16 %v1290, %v1282
        %v1691 = vpack.c.b16 %v1291, %v1283
        %v1692 = vpack.c.b16 %v1292, %v1284
        %v1693 = vpack.c.b16 %v1293, %v1285
        %v1694 = vpack.c.b16 %v1294, %v1286
        %v1695 = vpack.c.b16 %v1295, %v1287
        %v1696 = vpack.c.b16 %v1304, %v1296
        %v1697 = vpack.c.b16 %v1305, %v1297
        %v1698 = vpack.c.b16 %v1306, %v1298
        %v1699 = vpack.c.b16 %v1307, %v1299
        %v1700 = vpack.c.b16 %v1308, %v1300
        %v1701 = vpack.c.b16 %v1309, %v1301
        %v1702 = vpack.c.b16 %v1310, %v1302
        %v1703 = vpack.c.b16 %v1311, %v1303
        %v1704 = vpack.c.b16 %v1320, %v1312
        %v1705 = vpack.c.b16 %v1321, %v1313
        %v1706 = vpack.c.b16 %v1322, %v1314
        %v1707 = vpack.c.b16 %v1323, %v1315
        %v1708 = vpack.c.b16 %v1324, %v1316
        %v1709 = vpack.c.b16 %v1325, %v1317
        %v1710 = vpack.c.b16 %v1326, %v1318
        %v1711 = vpack.c.b16 %v1327, %v1319
        %v1712 = vpack.c.b16 %v1336, %v1328
        %v1713 = vpack.c.b16 %v1337, %v1329
        %v1714 = vpack.c.b16 %v1338, %v1330
        %v1715 = vpack.c.b16 %v1339, %v1331
        %v1716 = vpack.c.b16 %v1340, %v1332
        %v1717 = vpack.c.b16 %v1341, %v1333
        %v1718 = vpack.c.b16 %v1342, %v1334
        %v1719 = vpack.c.b16 %v1343, %v1335
        %v1720 = vpack.c.b16 %v1352, %v1344
        %v1721 = vpack.c.b16 %v1353, %v1345
        %v1722 = vpack.c.b16 %v1354, %v1346
        %v1723 = vpack.c.b16 %v1355, %v1347
        %v1724 = vpack.c.b16 %v1356, %v1348
        %v1725 = vpack.c.b16 %v1357, %v1349
        %v1726 = vpack.c.b16 %v1358, %v1350
        %v1727 = vpack.c.b16 %v1359, %v1351
        %v1728 = vpack.c.b16 %v1368, %v1360
        %v1729 = vpack.c.b16 %v1369, %v1361
        %v1730 = vpack.c.b16 %v1370, %v1362
        %v1731 = vpack.c.b16 %v1371, %v1363
        %v1732 = vpack.c.b16 %v1372, %v1364
        %v1733 = vpack.c.b16 %v1373, %v1365
        %v1734 = vpack.c.b16 %v1374, %v1366
        %v1735 = vpack.c.b16 %v1375, %v1367
        %v1736 = vpack.c.b16 %v1384, %v1376
        %v1737 = vpack.c.b16 %v1385, %v1377
        %v1738 = vpack.c.b16 %v1386, %v1378
        %v1739 = vpack.c.b16 %v1387, %v1379
        %v1740 = vpack.c.b16 %v1388, %v1380
        %v1741 = vpack.c.b16 %v1389, %v1381
        %v1742 = vpack.c.b16 %v1390, %v1382
        %v1743 = vpack.c.b16 %v1391, %v1383
        %v1744 = vpack.c.b16 %v1400, %v1392
        %v1745 = vpack.c.b16 %v1401, %v1393
        %v1746 = vpack.c.b16 %v1402, %v1394
        %v1747 = vpack.c.b16 %v1403, %v1395
        %v1748 = vpack.c.b16 %v1404, %v1396
        %v1749 = vpack.c.b16 %v1405, %v1397
        %v1750 = vpack.c.b16 %v1406, %v1398
        %v1751 = vpack.c.b16 %v1407, %v1399
        %v1752 = vpack.c.b16 %v1416, %v1408
        %v1753 = vpack.c.b16 %v1417, %v1409
        %v1754 = vpack.c.b16 %v1418, %v1410
        %v1755 = vpack.c.b16 %v1419, %v1411
        %v1756 = vpack.c.b16 %v1420, %v1412
        %v1757 = vpack.c.b16 %v1421, %v1413
        %v1758 = vpack.c.b16 %v1422, %v1414
        %v1759 = vpack.c.b16 %v1423, %v1415
        %v1760 = vpack.c.b16 %v1432, %v1424
        %v1761 = vpack.c.b16 %v1433, %v1425
        %v1762 = vpack.c.b16 %v1434, %v1426
        %v1763 = vpack.c.b16 %v1435, %v1427
        %v1764 = vpack.c.b16 %v1436, %v1428
        %v1765 = vpack.c.b16 %v1437, %v1429
        %v1766 = vpack.c.b16 %v1438, %v1430
        %v1767 = vpack.c.b16 %v1439, %v1431
        %v1768 = vpack.c.b16 %v1448, %v1440
        %v1769 = vpack.c.b16 %v1449, %v1441
        %v1770 = vpack.c.b16 %v1450, %v1442
        %v1771 = vpack.c.b16 %v1451, %v1443
        %v1772 = vpack.c.b16 %v1452, %v1444
        %v1773 = vpack.c.b16 %v1453, %v1445
        %v1774 = vpack.c.b16 %v1454, %v1446
        %v1775 = vpack.c.b16 %v1455, %v1447
        %v1776 = vpack.c.b16 %v1464, %v1456
        %v1777 = vpack.c.b16 %v1465, %v1457
        %v1778 = vpack.c.b16 %v1466, %v1458
        %v1779 = vpack.c.b16 %v1467, %v1459
        %v1780 = vpack.c.b16 %v1468, %v1460
        %v1781 = vpack.c.b16 %v1469, %v1461
        %v1782 = vpack.c.b16 %v1470, %v1462
        %v1783 = vpack.c.b16 %v1471, %v1463
        %v1784 = vpack.c.b16 %v1480, %v1472
        %v1785 = vpack.c.b16 %v1481, %v1473
        %v1786 = vpack.c.b16 %v1482, %v1474
        %v1787 = vpack.c.b16 %v1483, %v1475
        %v1788 = vpack.c.b16 %v1484, %v1476
        %v1789 = vpack.c.b16 %v1485, %v1477
        %v1790 = vpack.c.b16 %v1486, %v1478
        %v1791 = vpack.c.b16 %v1487, %v1479
        %v1792 = vpack.c.b16 %v1496, %v1488
        %v1793 = vpack.c.b16 %v1497, %v1489
        %v1794 = vpack.c.b16 %v1498, %v1490
        %v1795 = vpack.c.b16 %v1499, %v1491
        %v1796 = vpack.c.b16 %v1500, %v1492
        %v1797 = vpack.c.b16 %v1501, %v1493
        %v1798 = vpack.c.b16 %v1502, %v1494
        %v1799 = vpack.c.b16 %v1503, %v1495
        %v1800 = vpack.c.b16 %v1512, %v1504
        %v1801 = vpack.c.b16 %v1513, %v1505
        %v1802 = vpack.c.b16 %v1514, %v1506
        %v1803 = vpack.c.b16 %v1515, %v1507
        %v1804 = vpack.c.b16 %v1516, %v1508
        %v1805 = vpack.c.b16 %v1517, %v1509
        %v1806 = vpack.c.b16 %v1518, %v1510
        %v1807 = vpack.c.b16 %v1519, %v1511
        %v1808 = vpack.c.b16 %v1528, %v1520
        %v1809 = vpack.c.b16 %v1529, %v1521
        %v1810 = vpack.c.b16 %v1530, %v1522
        %v1811 = vpack.c.b16 %v1531, %v1523
        %v1812 = vpack.c.b16 %v1532, %v1524
        %v1813 = vpack.c.b16 %v1533, %v1525
        %v1814 = vpack.c.b16 %v1534, %v1526
        %v1815 = vpack.c.b16 %v1535, %v1527
        %v1816 = vpack.c.b16 %v1544, %v1536
        %v1817 = vpack.c.b16 %v1545, %v1537
        %v1818 = vpack.c.b16 %v1546, %v1538
        %v1819 = vpack.c.b16 %v1547, %v1539
        %v1820 = vpack.c.b16 %v1548, %v1540
        %v1821 = vpack.c.b16 %v1549, %v1541
        %v1822 = vpack.c.b16 %v1550, %v1542
        %v1823 = vpack.c.b16 %v1551, %v1543
        %v1824 = vpack.c.b16 %v1560, %v1552
        %v1825 = vpack.c.b16 %v1561, %v1553
        %v1826 = vpack.c.b16 %v1562, %v1554
        %v1827 = vpack.c.b16 %v1563, %v1555
        %v1828 = vpack.c.b16 %v1564, %v1556
        %v1829 = vpack.c.b16 %v1565, %v1557
        %v1830 = vpack.c.b16 %v1566, %v1558
        %v1831 = vpack.c.b16 %v1567, %v1559
        %v1832 = vpack.c.b16 %v1576, %v1568
        %v1833 = vpack.c.b16 %v1577, %v1569
        %v1834 = vpack.c.b16 %v1578, %v1570
        %v1835 = vpack.c.b16 %v1579, %v1571
        %v1836 = vpack.c.b16 %v1580, %v1572
        %v1837 = vpack.c.b16 %v1581, %v1573
        %v1838 = vpack.c.b16 %v1582, %v1574
        %v1839 = vpack.c.b16 %v1583, %v1575
        %2096 = vmatprep.subr.bf16.mxu0 %v1585
        %2097 = vmatpush1.bf16.msra.mxu0 %v1584
        %2098 = vmatprep.subr.bf16.mxu0 %v1593
        %2099 = vmatpush1.bf16.msra.mxu0 %v1592
        %2100 = vmatprep.subr.bf16.mxu0 %v1601
        %2101 = vmatpush1.bf16.msra.mxu0 %v1600
        %2102 = vmatprep.subr.bf16.mxu0 %v1609
        %2103 = vmatpush1.bf16.msra.mxu0 %v1608
        %2104 = vmatprep.subr.bf16.mxu0 %v1617
        %2105 = vmatpush1.bf16.msra.mxu0 %v1616
        %2106 = vmatprep.subr.bf16.mxu0 %v1625
        %2107 = vmatpush1.bf16.msra.mxu0 %v1624
        %2108 = vmatprep.subr.bf16.mxu0 %v1633
        %2109 = vmatpush1.bf16.msra.mxu0 %v1632
        %2110 = vmatprep.subr.bf16.mxu0 %v1641
        %2111 = vmatpush1.bf16.msra.mxu0 %v1640
        %2112 = vmatprep.subr.bf16.mxu0 %v1649
        %2113 = vmatpush1.bf16.msra.mxu0 %v1648
        %2114 = vmatprep.subr.bf16.mxu0 %v1657
        %2115 = vmatpush1.bf16.msra.mxu0 %v1656
        %2116 = vmatprep.subr.bf16.mxu0 %v1665
        %2117 = vmatpush1.bf16.msra.mxu0 %v1664
        %2118 = vmatprep.subr.bf16.mxu0 %v1673
        %2119 = vmatpush1.bf16.msra.mxu0 %v1672
        %2120 = vmatprep.subr.bf16.mxu0 %v1681
        %2121 = vmatpush1.bf16.msra.mxu0 %v1680
        %2122 = vmatprep.subr.bf16.mxu0 %v1689
        %2123 = vmatpush1.bf16.msra.mxu0 %v1688
        %2124 = vmatprep.subr.bf16.mxu0 %v1697
        %2125 = vmatpush1.bf16.msra.mxu0 %v1696
        %2126 = vmatprep.subr.bf16.mxu0 %v1705
        %2127 = vmatpush1.bf16.msra.mxu0 %v1704
        %2128 = vmatprep.mubr.bf16.mxu0 %v809
        %2129 = vmatmul.mubr.bf16.gmra.mrb[0].mxu0 %v802
        %v2130 = vpop.f32.mrb[0].mxu0
        %v2131 = vadd.f32 0.0, %v2130
        %v2132 = vpop.f32.mrb[0].mxu0
        %v2133 = vadd.f32 0.0, %v2132
        %v2134 = vpop.f32.mrb[0].mxu0
        %v2135 = vpop.f32.mrb[0].mxu0
        %2136 = vdwg.mxu0
        %2137 = vmatprep.subr.bf16.mxu0 %v1713
        %2138 = vmatpush1.bf16.msra.mxu0 %v1712
        %2139 = vmatprep.subr.bf16.mxu0 %v1721
        %2140 = vmatpush1.bf16.msra.mxu0 %v1720
        %2141 = vmatprep.subr.bf16.mxu0 %v1729
        %2142 = vmatpush1.bf16.msra.mxu0 %v1728
        %2143 = vmatprep.subr.bf16.mxu0 %v1737
        %2144 = vmatpush1.bf16.msra.mxu0 %v1736
        %2145 = vmatprep.subr.bf16.mxu0 %v1745
        %2146 = vmatpush1.bf16.msra.mxu0 %v1744
        %2147 = vmatprep.subr.bf16.mxu0 %v1753
        %2148 = vmatpush1.bf16.msra.mxu0 %v1752
        %2149 = vmatprep.subr.bf16.mxu0 %v1761
        %2150 = vmatpush1.bf16.msra.mxu0 %v1760
        %2151 = vmatprep.subr.bf16.mxu0 %v1769
        %2152 = vmatpush1.bf16.msra.mxu0 %v1768
        %2153 = vmatprep.subr.bf16.mxu0 %v1777
        %2154 = vmatpush1.bf16.msra.mxu0 %v1776
        %2155 = vmatprep.subr.bf16.mxu0 %v1785
        %2156 = vmatpush1.bf16.msra.mxu0 %v1784
        %2157 = vmatprep.subr.bf16.mxu0 %v1793
        %2158 = vmatpush1.bf16.msra.mxu0 %v1792
        %2159 = vmatprep.subr.bf16.mxu0 %v1801
        %2160 = vmatpush1.bf16.msra.mxu0 %v1800
        %2161 = vmatprep.subr.bf16.mxu0 %v1809
        %2162 = vmatpush1.bf16.msra.mxu0 %v1808
        %2163 = vmatprep.subr.bf16.mxu0 %v1817
        %2164 = vmatpush1.bf16.msra.mxu0 %v1816
        %2165 = vmatprep.subr.bf16.mxu0 %v1825
        %2166 = vmatpush1.bf16.msra.mxu0 %v1824
        %2167 = vmatprep.subr.bf16.mxu0 %v1833
        %2168 = vmatpush1.bf16.msra.mxu0 %v1832
        %2169 = vmatprep.mubr.bf16.mxu0 %v811
        %2170 = vmatmul.mubr.bf16.gmra.mrb[0].mxu0 %v810
        %v2171 = vpop.f32.mrb[0].mxu0
        %v2172 = vadd.f32 %v2131, %v2171
        %v2173 = vpop.f32.mrb[0].mxu0
        %v2174 = vadd.f32 %v2133, %v2173
        %v2175 = vpop.f32.mrb[0].mxu0
        %v2176 = vpop.f32.mrb[0].mxu0
        %2177 = vdwg.mxu0
        %2178 = vmatprep.subr.bf16.mxu0 %v1587
        %2179 = vmatpush1.bf16.msra.mxu0 %v1586
        %2180 = vmatprep.subr.bf16.mxu0 %v1595
        %2181 = vmatpush1.bf16.msra.mxu0 %v1594
        %2182 = vmatprep.subr.bf16.mxu0 %v1603
        %2183 = vmatpush1.bf16.msra.mxu0 %v1602
        %2184 = vmatprep.subr.bf16.mxu0 %v1611
        %2185 = vmatpush1.bf16.msra.mxu0 %v1610
        %2186 = vmatprep.subr.bf16.mxu0 %v1619
        %2187 = vmatpush1.bf16.msra.mxu0 %v1618
        %2188 = vmatprep.subr.bf16.mxu0 %v1627
        %2189 = vmatpush1.bf16.msra.mxu0 %v1626
        %2190 = vmatprep.subr.bf16.mxu0 %v1635
        %2191 = vmatpush1.bf16.msra.mxu0 %v1634
        %2192 = vmatprep.subr.bf16.mxu0 %v1643
        %2193 = vmatpush1.bf16.msra.mxu0 %v1642
        %2194 = vmatprep.subr.bf16.mxu0 %v1651
        %2195 = vmatpush1.bf16.msra.mxu0 %v1650
        %2196 = vmatprep.subr.bf16.mxu0 %v1659
        %2197 = vmatpush1.bf16.msra.mxu0 %v1658
        %2198 = vmatprep.subr.bf16.mxu0 %v1667
        %2199 = vmatpush1.bf16.msra.mxu0 %v1666
        %2200 = vmatprep.subr.bf16.mxu0 %v1675
        %2201 = vmatpush1.bf16.msra.mxu0 %v1674
        %2202 = vmatprep.subr.bf16.mxu0 %v1683
        %2203 = vmatpush1.bf16.msra.mxu0 %v1682
        %2204 = vmatprep.subr.bf16.mxu0 %v1691
        %2205 = vmatpush1.bf16.msra.mxu0 %v1690
        %2206 = vmatprep.subr.bf16.mxu0 %v1699
        %2207 = vmatpush1.bf16.msra.mxu0 %v1698
        %2208 = vmatprep.subr.bf16.mxu0 %v1707
        %2209 = vmatpush1.bf16.msra.mxu0 %v1706
        %2210 = vmatprep.mubr.bf16.mxu0 %v809
        %2211 = vmatmul.mubr.bf16.gmra.mrb[0].mxu0 %v802
        %v2212 = vpop.f32.mrb[0].mxu0
        %v2213 = vadd.f32 0.0, %v2212
        %v2214 = vpop.f32.mrb[0].mxu0
        %v2215 = vadd.f32 0.0, %v2214
        %v2216 = vpop.f32.mrb[0].mxu0
        %v2217 = vpop.f32.mrb[0].mxu0
        %2218 = vdwg.mxu0
        %2219 = vmatprep.subr.bf16.mxu0 %v1715
        %2220 = vmatpush1.bf16.msra.mxu0 %v1714
        %2221 = vmatprep.subr.bf16.mxu0 %v1723
        %2222 = vmatpush1.bf16.msra.mxu0 %v1722
        %2223 = vmatprep.subr.bf16.mxu0 %v1731
        %2224 = vmatpush1.bf16.msra.mxu0 %v1730
        %2225 = vmatprep.subr.bf16.mxu0 %v1739
        %2226 = vmatpush1.bf16.msra.mxu0 %v1738
        %2227 = vmatprep.subr.bf16.mxu0 %v1747
        %2228 = vmatpush1.bf16.msra.mxu0 %v1746
        %2229 = vmatprep.subr.bf16.mxu0 %v1755
        %2230 = vmatpush1.bf16.msra.mxu0 %v1754
        %2231 = vmatprep.subr.bf16.mxu0 %v1763
        %2232 = vmatpush1.bf16.msra.mxu0 %v1762
        %2233 = vmatprep.subr.bf16.mxu0 %v1771
        %2234 = vmatpush1.bf16.msra.mxu0 %v1770
        %2235 = vmatprep.subr.bf16.mxu0 %v1779
        %2236 = vmatpush1.bf16.msra.mxu0 %v1778
        %2237 = vmatprep.subr.bf16.mxu0 %v1787
        %2238 = vmatpush1.bf16.msra.mxu0 %v1786
        %2239 = vmatprep.subr.bf16.mxu0 %v1795
        %2240 = vmatpush1.bf16.msra.mxu0 %v1794
        %2241 = vmatprep.subr.bf16.mxu0 %v1803
        %2242 = vmatpush1.bf16.msra.mxu0 %v1802
        %2243 = vmatprep.subr.bf16.mxu0 %v1811
        %2244 = vmatpush1.bf16.msra.mxu0 %v1810
        %2245 = vmatprep.subr.bf16.mxu0 %v1819
        %2246 = vmatpush1.bf16.msra.mxu0 %v1818
        %2247 = vmatprep.subr.bf16.mxu0 %v1827
        %2248 = vmatpush1.bf16.msra.mxu0 %v1826
        %2249 = vmatprep.subr.bf16.mxu0 %v1835
        %2250 = vmatpush1.bf16.msra.mxu0 %v1834
        %2251 = vmatprep.mubr.bf16.mxu0 %v811
        %2252 = vmatmul.mubr.bf16.gmra.mrb[0].mxu0 %v810
        %v2253 = vpop.f32.mrb[0].mxu0
        %v2254 = vadd.f32 %v2213, %v2253
        %v2255 = vpop.f32.mrb[0].mxu0
        %v2256 = vadd.f32 %v2215, %v2255
        %v2257 = vpop.f32.mrb[0].mxu0
        %v2258 = vpop.f32.mrb[0].mxu0
        %2259 = vdwg.mxu0
        %2260 = vmatprep.subr.bf16.mxu0 %v1589
        %2261 = vmatpush1.bf16.msra.mxu0 %v1588
        %2262 = vmatprep.subr.bf16.mxu0 %v1597
        %2263 = vmatpush1.bf16.msra.mxu0 %v1596
        %2264 = vmatprep.subr.bf16.mxu0 %v1605
        %2265 = vmatpush1.bf16.msra.mxu0 %v1604
        %2266 = vmatprep.subr.bf16.mxu0 %v1613
        %2267 = vmatpush1.bf16.msra.mxu0 %v1612
        %2268 = vmatprep.subr.bf16.mxu0 %v1621
        %2269 = vmatpush1.bf16.msra.mxu0 %v1620
        %2270 = vmatprep.subr.bf16.mxu0 %v1629
        %2271 = vmatpush1.bf16.msra.mxu0 %v1628
        %2272 = vmatprep.subr.bf16.mxu0 %v1637
        %2273 = vmatpush1.bf16.msra.mxu0 %v1636
        %2274 = vmatprep.subr.bf16.mxu0 %v1645
        %2275 = vmatpush1.bf16.msra.mxu0 %v1644
        %2276 = vmatprep.subr.bf16.mxu0 %v1653
        %2277 = vmatpush1.bf16.msra.mxu0 %v1652
        %2278 = vmatprep.subr.bf16.mxu0 %v1661
        %2279 = vmatpush1.bf16.msra.mxu0 %v1660
        %2280 = vmatprep.subr.bf16.mxu0 %v1669
        %2281 = vmatpush1.bf16.msra.mxu0 %v1668
        %2282 = vmatprep.subr.bf16.mxu0 %v1677
        %2283 = vmatpush1.bf16.msra.mxu0 %v1676
        %2284 = vmatprep.subr.bf16.mxu0 %v1685
        %2285 = vmatpush1.bf16.msra.mxu0 %v1684
        %2286 = vmatprep.subr.bf16.mxu0 %v1693
        %2287 = vmatpush1.bf16.msra.mxu0 %v1692
        %2288 = vmatprep.subr.bf16.mxu0 %v1701
        %2289 = vmatpush1.bf16.msra.mxu0 %v1700
        %2290 = vmatprep.subr.bf16.mxu0 %v1709
        %2291 = vmatpush1.bf16.msra.mxu0 %v1708
        %2292 = vmatprep.mubr.bf16.mxu0 %v809
        %2293 = vmatmul.mubr.bf16.gmra.mrb[0].mxu0 %v802
        %v2294 = vpop.f32.mrb[0].mxu0
        %v2295 = vadd.f32 0.0, %v2294
        %v2296 = vpop.f32.mrb[0].mxu0
        %v2297 = vadd.f32 0.0, %v2296
        %v2298 = vpop.f32.mrb[0].mxu0
        %v2299 = vpop.f32.mrb[0].mxu0
        %2300 = vdwg.mxu0
        %2301 = vmatprep.subr.bf16.mxu0 %v1717
        %2302 = vmatpush1.bf16.msra.mxu0 %v1716
        %2303 = vmatprep.subr.bf16.mxu0 %v1725
        %2304 = vmatpush1.bf16.msra.mxu0 %v1724
        %2305 = vmatprep.subr.bf16.mxu0 %v1733
        %2306 = vmatpush1.bf16.msra.mxu0 %v1732
        %2307 = vmatprep.subr.bf16.mxu0 %v1741
        %2308 = vmatpush1.bf16.msra.mxu0 %v1740
        %2309 = vmatprep.subr.bf16.mxu0 %v1749
        %2310 = vmatpush1.bf16.msra.mxu0 %v1748
        %2311 = vmatprep.subr.bf16.mxu0 %v1757
        %2312 = vmatpush1.bf16.msra.mxu0 %v1756
        %2313 = vmatprep.subr.bf16.mxu0 %v1765
        %2314 = vmatpush1.bf16.msra.mxu0 %v1764
        %2315 = vmatprep.subr.bf16.mxu0 %v1773
        %2316 = vmatpush1.bf16.msra.mxu0 %v1772
        %2317 = vmatprep.subr.bf16.mxu0 %v1781
        %2318 = vmatpush1.bf16.msra.mxu0 %v1780
        %2319 = vmatprep.subr.bf16.mxu0 %v1789
        %2320 = vmatpush1.bf16.msra.mxu0 %v1788
        %2321 = vmatprep.subr.bf16.mxu0 %v1797
        %2322 = vmatpush1.bf16.msra.mxu0 %v1796
        %2323 = vmatprep.subr.bf16.mxu0 %v1805
        %2324 = vmatpush1.bf16.msra.mxu0 %v1804
        %2325 = vmatprep.subr.bf16.mxu0 %v1813
        %2326 = vmatpush1.bf16.msra.mxu0 %v1812
        %2327 = vmatprep.subr.bf16.mxu0 %v1821
        %2328 = vmatpush1.bf16.msra.mxu0 %v1820
        %2329 = vmatprep.subr.bf16.mxu0 %v1829
        %2330 = vmatpush1.bf16.msra.mxu0 %v1828
        %2331 = vmatprep.subr.bf16.mxu0 %v1837
        %2332 = vmatpush1.bf16.msra.mxu0 %v1836
        %2333 = vmatprep.mubr.bf16.mxu0 %v811
        %2334 = vmatmul.mubr.bf16.gmra.mrb[0].mxu0 %v810
        %v2335 = vpop.f32.mrb[0].mxu0
        %v2336 = vadd.f32 %v2295, %v2335
        %v2337 = vpop.f32.mrb[0].mxu0
        %v2338 = vadd.f32 %v2297, %v2337
        %v2339 = vpop.f32.mrb[0].mxu0
        %v2340 = vpop.f32.mrb[0].mxu0
        %2341 = vdwg.mxu0
        %2342 = vmatprep.subr.bf16.mxu0 %v1591
        %2343 = vmatpush1.bf16.msra.mxu0 %v1590
        %2344 = vmatprep.subr.bf16.mxu0 %v1599
        %2345 = vmatpush1.bf16.msra.mxu0 %v1598
        %2346 = vmatprep.subr.bf16.mxu0 %v1607
        %2347 = vmatpush1.bf16.msra.mxu0 %v1606
        %2348 = vmatprep.subr.bf16.mxu0 %v1615
        %2349 = vmatpush1.bf16.msra.mxu0 %v1614
        %2350 = vmatprep.subr.bf16.mxu0 %v1623
        %2351 = vmatpush1.bf16.msra.mxu0 %v1622
        %2352 = vmatprep.subr.bf16.mxu0 %v1631
        %2353 = vmatpush1.bf16.msra.mxu0 %v1630
        %2354 = vmatprep.subr.bf16.mxu0 %v1639
        %2355 = vmatpush1.bf16.msra.mxu0 %v1638
        %2356 = vmatprep.subr.bf16.mxu0 %v1647
        %2357 = vmatpush1.bf16.msra.mxu0 %v1646
        %2358 = vmatprep.subr.bf16.mxu0 %v1655
        %2359 = vmatpush1.bf16.msra.mxu0 %v1654
        %2360 = vmatprep.subr.bf16.mxu0 %v1663
        %2361 = vmatpush1.bf16.msra.mxu0 %v1662
        %2362 = vmatprep.subr.bf16.mxu0 %v1671
        %2363 = vmatpush1.bf16.msra.mxu0 %v1670
        %2364 = vmatprep.subr.bf16.mxu0 %v1679
        %2365 = vmatpush1.bf16.msra.mxu0 %v1678
        %2366 = vmatprep.subr.bf16.mxu0 %v1687
        %2367 = vmatpush1.bf16.msra.mxu0 %v1686
        %2368 = vmatprep.subr.bf16.mxu0 %v1695
        %2369 = vmatpush1.bf16.msra.mxu0 %v1694
        %2370 = vmatprep.subr.bf16.mxu0 %v1703
        %2371 = vmatpush1.bf16.msra.mxu0 %v1702
        %2372 = vmatprep.subr.bf16.mxu0 %v1711
        %2373 = vmatpush1.bf16.msra.mxu0 %v1710
        %2374 = vmatprep.mubr.bf16.mxu0 %v809
        %2375 = vmatmul.mubr.bf16.gmra.mrb[0].mxu0 %v802
        %v2376 = vpop.f32.mrb[0].mxu0
        %v2377 = vadd.f32 0.0, %v2376
        %v2378 = vpop.f32.mrb[0].mxu0
        %v2379 = vadd.f32 0.0, %v2378
        %v2380 = vpop.f32.mrb[0].mxu0
        %v2381 = vpop.f32.mrb[0].mxu0
        %2382 = vdwg.mxu0
        %2383 = vmatprep.subr.bf16.mxu0 %v1719
        %2384 = vmatpush1.bf16.msra.mxu0 %v1718
        %2385 = vmatprep.subr.bf16.mxu0 %v1727
        %2386 = vmatpush1.bf16.msra.mxu0 %v1726
        %2387 = vmatprep.subr.bf16.mxu0 %v1735
        %2388 = vmatpush1.bf16.msra.mxu0 %v1734
        %2389 = vmatprep.subr.bf16.mxu0 %v1743
        %2390 = vmatpush1.bf16.msra.mxu0 %v1742
        %2391 = vmatprep.subr.bf16.mxu0 %v1751
        %2392 = vmatpush1.bf16.msra.mxu0 %v1750
        %2393 = vmatprep.subr.bf16.mxu0 %v1759
        %2394 = vmatpush1.bf16.msra.mxu0 %v1758
        %2395 = vmatprep.subr.bf16.mxu0 %v1767
        %2396 = vmatpush1.bf16.msra.mxu0 %v1766
        %2397 = vmatprep.subr.bf16.mxu0 %v1775
        %2398 = vmatpush1.bf16.msra.mxu0 %v1774
        %2399 = vmatprep.subr.bf16.mxu0 %v1783
        %2400 = vmatpush1.bf16.msra.mxu0 %v1782
        %2401 = vmatprep.subr.bf16.mxu0 %v1791
        %2402 = vmatpush1.bf16.msra.mxu0 %v1790
        %2403 = vmatprep.subr.bf16.mxu0 %v1799
        %2404 = vmatpush1.bf16.msra.mxu0 %v1798
        %2405 = vmatprep.subr.bf16.mxu0 %v1807
        %2406 = vmatpush1.bf16.msra.mxu0 %v1806
        %2407 = vmatprep.subr.bf16.mxu0 %v1815
        %2408 = vmatpush1.bf16.msra.mxu0 %v1814
        %2409 = vmatprep.subr.bf16.mxu0 %v1823
        %2410 = vmatpush1.bf16.msra.mxu0 %v1822
        %2411 = vmatprep.subr.bf16.mxu0 %v1831
        %2412 = vmatpush1.bf16.msra.mxu0 %v1830
        %2413 = vmatprep.subr.bf16.mxu0 %v1839
        %2414 = vmatpush1.bf16.msra.mxu0 %v1838
        %2415 = vmatprep.mubr.bf16.mxu0 %v811
        %2416 = vmatmul.mubr.bf16.gmra.mrb[0].mxu0 %v810
        %v2417 = vpop.f32.mrb[0].mxu0
        %v2418 = vadd.f32 %v2377, %v2417
        %v2419 = vpop.f32.mrb[0].mxu0
        %v2420 = vadd.f32 %v2379, %v2419
        %v2421 = vpop.f32.mrb[0].mxu0
        %v2422 = vpop.f32.mrb[0].mxu0
        %2423 = vdwg.mxu0
        %v2432 = vcombine.low %v2172, %v2174
        %v2433 = vcombine.low %v2254, %v2256
        %v2435 = vunpack.c.l.s4 1983009808
        %v2436 = vunpack.c.0.s8 %v2435
        %v2437 = vlaneseq
        %v2438 = vshrl.u32 %v2437, 7
        %v2439 = vsub.s32 %v2436, %v2438
        %v2440 = vrot.slane %v2432, %v2439
        %v2442 = vunpack.c.l.s4 1983009808
        %v2443 = vunpack.c.0.s8 %v2442
        %v2444 = vlaneseq
        %v2445 = vshrl.u32 %v2444, 7
        %v2446 = vsub.s32 %v2443, %v2445
        %v2447 = vrot.slane %v2433, %v2446
        %v2448 = vcombine.low %v2440, %v2447
        %v2449 = vcombine.low %v2336, %v2338
        %v2450 = vcombine.low %v2418, %v2420
        %v2452 = vunpack.c.l.s4 1983009808
        %v2453 = vunpack.c.0.s8 %v2452
        %v2454 = vlaneseq
        %v2455 = vshrl.u32 %v2454, 7
        %v2456 = vsub.s32 %v2453, %v2455
        %v2457 = vrot.slane %v2449, %v2456
        %v2459 = vunpack.c.l.s4 1983009808
        %v2460 = vunpack.c.0.s8 %v2459
        %v2461 = vlaneseq
        %v2462 = vshrl.u32 %v2461, 7
        %v2463 = vsub.s32 %v2460, %v2462
        %v2464 = vrot.slane %v2450, %v2463
        %v2465 = vcombine.low %v2457, %v2464
        %v2468 = vadd.f32 %v528, %v2448
        %v2469 = vadd.f32 %v529, %v2465
        %2470 = vst [vmem:[%s527] sm:$0xff] %v2468
        %2471 = vst [vmem:[%s527 + $0x8] sm:$0xff] %v2469
        %p2472 = scmp.eq.s32.totalorder %s28, 3
        %p2473 = pnand %p2472, %p405
        %p2474 = pneg %p2473
        // Predicated region
        $region65: #{gaussian_diffusion_forward.21} parent=47 // pred_check
          _
        $region66: #{gaussian_diffusion_forward.21} parent=47 // pred_check_branch
          %2476 = sbr.rel (%p2473) target = $region68
        $region67: #{gaussian_diffusion_forward.21} parent=47 // pred_region
          %vm2477 = vcmask 1024
          %2478 = vst.msk [vmem:[%s7] sm:$0x3] %vm2477, 0.0
        $region68: #{gaussian_diffusion_forward.21} parent=47 // pred_fallthru
          _
        // Predicated region
        $region69: #{gaussian_diffusion_forward.21} parent=47 // pred_check
          %p2479 = pneg %p2472
        $region70: #{gaussian_diffusion_forward.21} parent=47 // pred_check_branch
          %2481 = sbr.rel (%p2479) target = $region72
        $region71: #{gaussian_diffusion_forward.21} parent=47 // pred_region
          %v2482 = vld [vmem:[%s527] sm:$0xff]
          %v2483 = vld [vmem:[%s527 + $0x8] sm:$0xff]
          %v2484 = vld [vmem:[%s340] sm:$0xff]
          %v2486 = vlaneseq
          %v2487 = vshrl.u32 %v2486, 7
          %v2488 = vsub.s32 0, %v2487
          %v2489 = vrot.slane %v2484, %v2488
          %v2490 = vlaneseq
          %v2491 = vshrl.u32 %v2490, 7
          %v2492 = vsub.s32 1, %v2491
          %v2493 = vrot.slane %v2484, %v2492
          %v2494 = vlaneseq
          %v2495 = vshrl.u32 %v2494, 7
          %v2496 = vsub.s32 2, %v2495
          %v2497 = vrot.slane %v2484, %v2496
          %v2498 = vlaneseq
          %v2499 = vshrl.u32 %v2498, 7
          %v2500 = vsub.s32 3, %v2499
          %v2501 = vrot.slane %v2484, %v2500
          %v2502 = vlaneseq
          %v2503 = vshrl.u32 %v2502, 7
          %v2504 = vsub.s32 4, %v2503
          %v2505 = vrot.slane %v2484, %v2504
          %v2506 = vlaneseq
          %v2507 = vshrl.u32 %v2506, 7
          %v2508 = vsub.s32 5, %v2507
          %v2509 = vrot.slane %v2484, %v2508
          %v2510 = vlaneseq
          %v2511 = vshrl.u32 %v2510, 7
          %v2512 = vsub.s32 6, %v2511
          %v2513 = vrot.slane %v2484, %v2512
          %v2514 = vlaneseq
          %v2515 = vshrl.u32 %v2514, 7
          %v2516 = vsub.s32 7, %v2515
          %v2517 = vrot.slane %v2484, %v2516
          %v2518 = vcombine.low %v2489, %v2493
          %v2519 = vcombine.low %v2497, %v2501
          %v2521 = vunpack.c.l.s4 1983009808
          %v2522 = vunpack.c.0.s8 %v2521
          %v2523 = vlaneseq
          %v2524 = vshrl.u32 %v2523, 7
          %v2525 = vsub.s32 %v2522, %v2524
          %v2526 = vrot.slane %v2518, %v2525
          %v2528 = vunpack.c.l.s4 1983009808
          %v2529 = vunpack.c.0.s8 %v2528
          %v2530 = vlaneseq
          %v2531 = vshrl.u32 %v2530, 7
          %v2532 = vsub.s32 %v2529, %v2531
          %v2533 = vrot.slane %v2519, %v2532
          %v2534 = vcombine.low %v2526, %v2533
          %v2535 = vcombine.low %v2505, %v2509
          %v2536 = vcombine.low %v2513, %v2517
          %v2538 = vunpack.c.l.s4 1983009808
          %v2539 = vunpack.c.0.s8 %v2538
          %v2540 = vlaneseq
          %v2541 = vshrl.u32 %v2540, 7
          %v2542 = vsub.s32 %v2539, %v2541
          %v2543 = vrot.slane %v2535, %v2542
          %v2545 = vunpack.c.l.s4 1983009808
          %v2546 = vunpack.c.0.s8 %v2545
          %v2547 = vlaneseq
          %v2548 = vshrl.u32 %v2547, 7
          %v2549 = vsub.s32 %v2546, %v2548
          %v2550 = vrot.slane %v2536, %v2549
          %v2551 = vcombine.low %v2543, %v2550
          %v2554 = vadd.f32 %v2482, %v2534
          %v2555 = vadd.f32 %v2483, %v2551
          %v2556 = vld [vmem:[%s403] sm:$0xff]
          %v2557 = vld [vmem:[%s403 + $0x8] sm:$0xff]
          %v2558 = vsub.f32 %v2554, %v2556
          %v2559 = vsub.f32 %v2555, %v2557
          %v2560 = vand.u32 2147483647, %v2558
          %v2561 = vand.u32 2147483647, %v2559
          %v2562 = vld [vmem:[%s7] sm:$0x3]
          %v2565 = vcombine.high %v2560, %v2560
          %v2567 = vunpack.c.l.s4 1983009808
          %v2568 = vunpack.c.0.s8 %v2567
          %v2569 = vlaneseq
          %v2570 = vshrl.u32 %v2569, 7
          %v2571 = vsub.s32 %v2568, %v2570
          %v2572 = vrot.slane %v2560, %v2571
          %v2574 = vunpack.c.l.s4 1983009808
          %v2575 = vunpack.c.0.s8 %v2574
          %v2576 = vlaneseq
          %v2577 = vshrl.u32 %v2576, 7
          %v2578 = vsub.s32 %v2575, %v2577
          %v2579 = vrot.slane %v2565, %v2578
          %v2580 = vcombine.high %v2572, %v2572
          %v2581 = vcombine.high %v2579, %v2579
          %v2582 = vcombine.high %v2561, %v2561
          %v2584 = vunpack.c.l.s4 1983009808
          %v2585 = vunpack.c.0.s8 %v2584
          %v2586 = vlaneseq
          %v2587 = vshrl.u32 %v2586, 7
          %v2588 = vsub.s32 %v2585, %v2587
          %v2589 = vrot.slane %v2561, %v2588
          %v2591 = vunpack.c.l.s4 1983009808
          %v2592 = vunpack.c.0.s8 %v2591
          %v2593 = vlaneseq
          %v2594 = vshrl.u32 %v2593, 7
          %v2595 = vsub.s32 %v2592, %v2594
          %v2596 = vrot.slane %v2582, %v2595
          %v2597 = vcombine.high %v2589, %v2589
          %v2598 = vcombine.high %v2596, %v2596
          %vm2607 = vcmask 1041408
          %v2608 = vsel %vm2607, %v2572, 0.0
          %v2609 = vsel %vm2607, %v2580, 0.0
          %v2610 = vadd.f32 %v2608, %v2609
          %v2611 = vsel %vm2607, %v2579, 0.0
          %v2612 = vadd.f32 %v2610, %v2611
          %v2613 = vsel %vm2607, %v2581, 0.0
          %v2614 = vadd.f32 %v2612, %v2613
          %v2615 = vsel %vm2607, %v2589, 0.0
          %v2616 = vadd.f32 %v2614, %v2615
          %v2617 = vsel %vm2607, %v2597, 0.0
          %v2618 = vadd.f32 %v2616, %v2617
          %v2619 = vsel %vm2607, %v2596, 0.0
          %v2620 = vadd.f32 %v2618, %v2619
          %v2621 = vsel %vm2607, %v2598, 0.0
          %v2622 = vadd.f32 %v2620, %v2621
          %2623 = vadd.xlane.f32.xlu0 %v2622
          %v2624 = vpop.xlane.xlu0 %2623
          %v2625 = vadd.f32 %v2562, %v2624
          %vm2626 = vcmask 1024
          %2627 = vst.msk [vmem:[%s7] sm:$0x3] %vm2626, %v2625
        $region72: #{gaussian_diffusion_forward.21} parent=47 // pred_fallthru
          _
        // Predicated region
        $region73: #{gaussian_diffusion_forward.21} parent=47 // pred_check
          %p2628 = pneg %p223
        $region74: #{gaussian_diffusion_forward.21} parent=47 // pred_check_branch
          %2630 = sbr.rel (%p2628) target = $region76
        $region75: #{gaussian_diffusion_forward.21} parent=47 // pred_region
          _
        $region76: #{gaussian_diffusion_forward.21} parent=47 // pred_fallthru
          _
        // Predicated region
        $region77: #{gaussian_diffusion_forward.21} parent=47 // pred_check
          %p2631 = pneg %p223
        $region78: #{gaussian_diffusion_forward.21} parent=47 // pred_check_branch
          %2633 = sbr.rel (%p2631) target = $region80
        $region79: #{gaussian_diffusion_forward.21} parent=47 // pred_region
          _
        $region80: #{gaussian_diffusion_forward.21} parent=47 // pred_fallthru
          _
      $region48: #{gaussian_diffusion_forward.21} parent=5 // pred_fallthru
        _
      %p2634 = scmp.le.s32.totalorder 2, %s19
      // Predicated region
      $region81: #{gaussian_diffusion_forward.21} parent=5 // pred_check
        %p2635 = pneg %p2634
      $region82: #{gaussian_diffusion_forward.21} parent=5 // pred_check_branch
        %2637 = sbr.rel (%p2635) target = $region84
      $region83: #{gaussian_diffusion_forward.21} parent=5 // pred_region
        %s2638 = ssub.s32 %s19, 2
      $region84: #{gaussian_diffusion_forward.21} parent=5 // pred_fallthru
        _
    $region6: #{gaussian_diffusion_forward.21} parent=1 // loop_footer
      %s23 = sadd.s32 1, %s19
    $region7: #{gaussian_diffusion_forward.21} parent=1 // loop_footer_branch
      %18 = sbr.rel target = $region3
    $region8: #{gaussian_diffusion_forward.21} parent=1 // loop_exit
      _
    %2639 = vsyncpa [#allocation5], 1
    %s2640 = scalar_lea.sflag [#allocation5], 1
    %2641 = vsyncpa %s2640, 1
    %2642 = vsyncpa [#allocation7], 1
    %s2643 = scalar_lea.sflag [#allocation7], 1
    %2644 = vsyncpa %s2643, 1

</llo_original>
